<compile_context>
chip_gen: v5e
topology: v5e:2x2
jax: 0.10.0
libtpu: 0.0.40
codegen_flags: <defaults>
</compile_context>

<pallas_src>
import functools

import jax
import jax.numpy as jnp
from jax.experimental import pallas as pl
from jax.experimental.pallas import tpu as pltpu

LANE = 128
_NEG_INF = -1e30  # bias for padded softmax lanes


def _round_up(n, m):
    return ((n + m - 1) // m) * m


def _mlp_kernel(
    x_ref,
    w1_ref, b1_ref,
    w2_ref, b2_ref,
    w3_ref, b3_ref,
    w4_ref, b4_ref,
    wa_ref, ba_ref,
    wvh_ref, bvh_ref,
    wv_ref, bv_ref,
    act_ref, val_ref,
):
    """One batch tile of the Grid2OpCustomModelTorch forward pass."""

    def dense(h_bf16, w_ref, b_ref):
        # bf16 x bf16 -> f32 accumulation on the MXU; bias added in f32.
        return (
            jnp.dot(h_bf16, w_ref[...], preferred_element_type=jnp.float32)
            + b_ref[...]
        )

    def relu_bf16(a_f32):
        return jnp.maximum(a_f32, 0.0).astype(jnp.bfloat16)

    h = x_ref[...]                                  # (tb, obs_pad) bf16
    h = relu_bf16(dense(h, w1_ref, b1_ref))
    h = relu_bf16(dense(h, w2_ref, b2_ref))
    h = relu_bf16(dense(h, w3_ref, b3_ref))
    h = relu_bf16(dense(h, w4_ref, b4_ref))

    # ---- Action head: softmax over the feature axis (f32 epilogue). ----
    logits = dense(h, wa_ref, ba_ref)               # padded lanes: bias -1e30
    m = jnp.max(logits, axis=-1, keepdims=True)
    e = jnp.exp(logits - m)
    denom = jnp.sum(e, axis=-1, keepdims=True)
    act_ref[...] = e * pl.reciprocal(denom, approx=True)

    # ---- Value head: ReLU hidden, then a VPU reduction (no N=1 matmul). ----
    vh = jnp.maximum(dense(h, wvh_ref, bvh_ref), 0.0)   # (tb, nact_pad) f32
    val = jnp.sum(vh * wv_ref[...], axis=-1, keepdims=True) + bv_ref[...]
    # Lane-dense store: broadcast the per-row value across the 128 lanes.
    val_ref[...] = jnp.broadcast_to(val, val_ref.shape)


def grid2op_model_forward(x, padded_params, *, num_outputs, block_b=128):
    """Runs the Pallas kernel.  Returns (action_probs, value) matching PyTorch:
       action_probs: (B, num_outputs) f32, value: (B,) f32 (already squeezed)."""
    batch, obs_dim = x.shape
    obs_pad = padded_params["w1"].shape[0]
    num_out_pad = padded_params["wa"].shape[1]

    # Pad the batch to a tile multiple and the obs features to the lane-aligned
    # width the weights were padded to; activations travel as bf16.
    batch_pad = _round_up(max(batch, 1), block_b)
    x_p = jnp.zeros((batch_pad, obs_pad), jnp.bfloat16)
    x_p = x_p.at[:batch, :obs_dim].set(x.astype(jnp.bfloat16))

    flat_params = [
        padded_params["w1"], padded_params["b1"],
        padded_params["w2"], padded_params["b2"],
        padded_params["w3"], padded_params["b3"],
        padded_params["w4"], padded_params["b4"],
        padded_params["wa"], padded_params["ba"],
        padded_params["wvh"], padded_params["bvh"],
        padded_params["wv"], padded_params["bv"],
    ]

    grid = (batch_pad // block_b,)

    # Activations move per grid step; weights/biases use a constant block index
    # so they are DMA'd once and stay resident in VMEM across batch tiles.
    x_spec = pl.BlockSpec((block_b, obs_pad), lambda i: (i, 0))
    weight_specs = [pl.BlockSpec(p.shape, lambda i: (0, 0)) for p in flat_params]
    out_specs = (
        pl.BlockSpec((block_b, num_out_pad), lambda i: (i, 0)),
        pl.BlockSpec((block_b, LANE), lambda i: (i, 0)),
    )

    # Size VMEM to the actual footprint (cap leaves headroom on v7x's 64 MiB).
    param_bytes = sum(int(p.size) * p.dtype.itemsize for p in flat_params)
    tile_bytes = block_b * (2 * obs_pad + 4 * num_out_pad + 4 * LANE)
    widest = max(int(p.shape[-1]) for p in flat_params)
    live_bytes = 6 * block_b * widest * 4        # in-kernel f32 temporaries
    vmem_limit = param_bytes + 4 * tile_bytes + live_bytes + (4 << 20)
    vmem_limit = int(min(max(vmem_limit, 16 << 20), 48 << 20))

    action_p, value_p = pl.pallas_call(
        _mlp_kernel,
        out_shape=(
            jax.ShapeDtypeStruct((batch_pad, num_out_pad), jnp.float32),
            jax.ShapeDtypeStruct((batch_pad, LANE), jnp.float32),
        ),
        grid=grid,
        in_specs=[x_spec] + weight_specs,
        out_specs=out_specs,
        compiler_params=pltpu.CompilerParams(
            dimension_semantics=("parallel",),
            vmem_limit_bytes=vmem_limit,
        ),
    )(x_p, *flat_params)

    return action_p[:batch, :num_outputs], value_p[:batch, 0]


def init_params(key, obs_dim, layer_sizes, num_outputs, n_actions):
    """Deterministic synthetic init (stand-in for orthogonal_ on a checkpoint).

    Weights are stored as (in, out) — i.e. the transpose of nn.Linear's
    (out, in) weight — so the kernel computes x @ W + b directly."""
    dims_in = [obs_dim] + list(layer_sizes[:-1])
    dims_out = list(layer_sizes)
    keys = jax.random.split(key, 7)

    def dense(k, d_in, d_out):
        kw, kb = jax.random.split(k)
        w = jax.random.normal(kw, (d_in, d_out), jnp.float32) / jnp.sqrt(
            jnp.float32(d_in)
        )
        b = 0.01 * jax.random.normal(kb, (d_out,), jnp.float32)
        return w, b

    params = {}
    for i, (di, do) in enumerate(zip(dims_in, dims_out), start=1):
        params[f"w{i}"], params[f"b{i}"] = dense(keys[i - 1], di, do)
    params["wa"], params["ba"] = dense(keys[4], layer_sizes[-1], num_outputs)
    params["wvh"], params["bvh"] = dense(keys[5], layer_sizes[-1], n_actions)
    params["wv"], params["bv"] = dense(keys[6], n_actions, 1)
    return params


def pad_and_cast_params(params):
    """Pad every dim to a multiple of 128, cast weights to bf16 (biases stay
    f32).  Padded action-logit lanes get a -1e30 bias so softmax masks them;
    all other padding is zeros (ReLU(0) = 0 keeps the math exact)."""

    def padded_w(name):
        w = params[name]
        r = _round_up(w.shape[0], LANE)
        c = _round_up(w.shape[1], LANE)
        out = jnp.zeros((r, c), jnp.float32).at[: w.shape[0], : w.shape[1]].set(w)
        return out.astype(jnp.bfloat16)

    def padded_b(name, fill=0.0):
        b = params[name]
        c = _round_up(b.shape[0], LANE)
        return jnp.full((1, c), fill, jnp.float32).at[0, : b.shape[0]].set(b)

    p = {}
    for i in range(1, 5):
        p[f"w{i}"] = padded_w(f"w{i}")
        p[f"b{i}"] = padded_b(f"b{i}")
    p["wa"] = padded_w("wa")
    p["ba"] = padded_b("ba", fill=_NEG_INF)
    p["wvh"] = padded_w("wvh")
    p["bvh"] = padded_b("bvh")
    # Value output weight kept as a (1, n_actions_pad) f32 row: the kernel does
    # a VPU reduction instead of an N=1 MXU matmul.
    wv_row = params["wv"][:, 0]
    c = _round_up(wv_row.shape[0], LANE)
    p["wv"] = jnp.zeros((1, c), jnp.float32).at[0, : wv_row.shape[0]].set(wv_row)
    p["bv"] = params["bv"].reshape(1, 1).astype(jnp.float32)
    return p


def reference_forward(x, params):
    """Pure-JAX f32 reference matching the PyTorch forward."""
    h = x
    for i in range(1, 5):
        h = jnp.maximum(h @ params[f"w{i}"] + params[f"b{i}"], 0.0)
    logits = h @ params["wa"] + params["ba"]
    action = jax.nn.softmax(logits, axis=-1)
    vh = jnp.maximum(h @ params["wvh"] + params["bvh"], 0.0)
    value = (vh @ params["wv"] + params["bv"])[:, 0]
    return action, value


if __name__ == "__main__":
    # Small shapes consistent with the module; deliberately NOT lane-aligned so
    # the padding / masking path is exercised (real model uses 1000-wide layers).
    BATCH = 8
    OBS_DIM = 90          # obs_space.shape[0]
    LAYER_SIZES = [96, 112, 100, 120]
    NUM_OUTPUTS = 70      # num_outputs (action logits)
    N_ACTIONS = 50        # action_space.n (value hidden width)

    key = jax.random.PRNGKey(0)
    k_obs, k_par = jax.random.split(key)
    obs = jax.random.normal(k_obs, (BATCH, OBS_DIM), jnp.float32)

    params = init_params(k_par, OBS_DIM, LAYER_SIZES, NUM_OUTPUTS, N_ACTIONS)
    padded_params = pad_and_cast_params(params)

    fwd = jax.jit(
        functools.partial(grid2op_model_forward, num_outputs=NUM_OUTPUTS)
    )
    action_probs, value_out = fwd(obs, padded_params)
    jax.block_until_ready((action_probs, value_out))

    # Correctness vs plain-JAX f32 reference (kernel runs bf16 weights with
    # f32 accumulation, so tolerances are loose but tight enough to be real).
    ref_action, ref_value = reference_forward(obs, params)

    assert action_probs.shape == (BATCH, NUM_OUTPUTS)
    assert value_out.shape == (BATCH,)
    assert jnp.allclose(jnp.sum(action_probs, axis=1), 1.0, atol=1e-2)
    assert jnp.allclose(action_probs, ref_action, atol=5e-2)
    assert jnp.allclose(value_out, ref_value, atol=5e-2, rtol=5e-2)

    print("KERNEL_OK")
</pallas_src>

<mosaic_0001>
module attributes {stable_mosaic.version = 11 : i64} {
  func.func @_mlp_kernel(%arg0: i32, %arg1: memref<128x128xbf16, #tpu.memory_space<vmem>>, %arg2: memref<128x128xbf16, #tpu.memory_space<vmem>>, %arg3: memref<1x128xf32, #tpu.memory_space<vmem>>, %arg4: memref<128x128xbf16, #tpu.memory_space<vmem>>, %arg5: memref<1x128xf32, #tpu.memory_space<vmem>>, %arg6: memref<128x128xbf16, #tpu.memory_space<vmem>>, %arg7: memref<1x128xf32, #tpu.memory_space<vmem>>, %arg8: memref<128x128xbf16, #tpu.memory_space<vmem>>, %arg9: memref<1x128xf32, #tpu.memory_space<vmem>>, %arg10: memref<128x128xbf16, #tpu.memory_space<vmem>>, %arg11: memref<1x128xf32, #tpu.memory_space<vmem>>, %arg12: memref<128x128xbf16, #tpu.memory_space<vmem>>, %arg13: memref<1x128xf32, #tpu.memory_space<vmem>>, %arg14: memref<1x128xf32, #tpu.memory_space<vmem>>, %arg15: memref<1x1xf32, #tpu.memory_space<vmem>>, %arg16: memref<128x128xf32, #tpu.memory_space<vmem>>, %arg17: memref<128x128xf32, #tpu.memory_space<vmem>>) attributes {dimension_semantics = [#tpu.dimension_semantics<parallel>], iteration_bounds = array<i64: 1>, scalar_prefetch = 0 : i64, scratch_operands = 0 : i64, tpu.core_type = #tpu.core_type<tc>, window_params = [{transform_indices = @transform_0, window_bounds = array<i64: 128, 128>}, {pipeline_mode = #tpu.pipeline_mode<synchronous>, transform_indices = @transform_1, window_bounds = array<i64: 128, 128>}, {pipeline_mode = #tpu.pipeline_mode<synchronous>, transform_indices = @transform_2, window_bounds = array<i64: 1, 128>}, {pipeline_mode = #tpu.pipeline_mode<synchronous>, transform_indices = @transform_3, window_bounds = array<i64: 128, 128>}, {pipeline_mode = #tpu.pipeline_mode<synchronous>, transform_indices = @transform_4, window_bounds = array<i64: 1, 128>}, {pipeline_mode = #tpu.pipeline_mode<synchronous>, transform_indices = @transform_5, window_bounds = array<i64: 128, 128>}, {pipeline_mode = #tpu.pipeline_mode<synchronous>, transform_indices = @transform_6, window_bounds = array<i64: 1, 128>}, {pipeline_mode = #tpu.pipeline_mode<synchronous>, transform_indices = @transform_7, window_bounds = array<i64: 128, 128>}, {pipeline_mode = #tpu.pipeline_mode<synchronous>, transform_indices = @transform_8, window_bounds = array<i64: 1, 128>}, {pipeline_mode = #tpu.pipeline_mode<synchronous>, transform_indices = @transform_9, window_bounds = array<i64: 128, 128>}, {pipeline_mode = #tpu.pipeline_mode<synchronous>, transform_indices = @transform_10, window_bounds = array<i64: 1, 128>}, {pipeline_mode = #tpu.pipeline_mode<synchronous>, transform_indices = @transform_11, window_bounds = array<i64: 128, 128>}, {pipeline_mode = #tpu.pipeline_mode<synchronous>, transform_indices = @transform_12, window_bounds = array<i64: 1, 128>}, {pipeline_mode = #tpu.pipeline_mode<synchronous>, transform_indices = @transform_13, window_bounds = array<i64: 1, 128>}, {pipeline_mode = #tpu.pipeline_mode<synchronous>, transform_indices = @transform_14, window_bounds = array<i64: 1, 1>}, {transform_indices = @transform_15, window_bounds = array<i64: 128, 128>}, {transform_indices = @transform_16, window_bounds = array<i64: 128, 128>}]} {
    %c0 = arith.constant 0 : index
    %c0_0 = arith.constant 0 : index
    %0 = vector.load %arg1[%c0, %c0_0] : memref<128x128xbf16, #tpu.memory_space<vmem>>, vector<128x128xbf16>
    %c0_1 = arith.constant 0 : index
    %c0_2 = arith.constant 0 : index
    %1 = vector.load %arg2[%c0_1, %c0_2] : memref<128x128xbf16, #tpu.memory_space<vmem>>, vector<128x128xbf16>
    %cst = arith.constant dense<0.000000e+00> : vector<128x128xf32>
    %2 = tpu.matmul %0, %1, %cst {dimension_numbers = #tpu.dot_dimension_numbers<[1], [0], [0], [1], [0, 0, 1, 1], [], []>} : vector<128x128xbf16>, vector<128x128xbf16>, vector<128x128xf32> -> vector<128x128xf32>
    %c0_3 = arith.constant 0 : index
    %c0_4 = arith.constant 0 : index
    %3 = vector.load %arg3[%c0_3, %c0_4] : memref<1x128xf32, #tpu.memory_space<vmem>>, vector<1x128xf32>
    %4 = vector.broadcast %3 : vector<1x128xf32> to vector<128x128xf32>
    %5 = arith.addf %2, %4 : vector<128x128xf32>
    %cst_5 = arith.constant 0.000000e+00 : f32
    %6 = vector.broadcast %cst_5 : f32 to vector<128x128xf32>
    %7 = arith.maximumf %5, %6 : vector<128x128xf32>
    %8 = arith.truncf %7 : vector<128x128xf32> to vector<128x128xbf16>
    %c0_6 = arith.constant 0 : index
    %c0_7 = arith.constant 0 : index
    %9 = vector.load %arg4[%c0_6, %c0_7] : memref<128x128xbf16, #tpu.memory_space<vmem>>, vector<128x128xbf16>
    %cst_8 = arith.constant dense<0.000000e+00> : vector<128x128xf32>
    %10 = tpu.matmul %8, %9, %cst_8 {dimension_numbers = #tpu.dot_dimension_numbers<[1], [0], [0], [1], [0, 0, 1, 1], [], []>} : vector<128x128xbf16>, vector<128x128xbf16>, vector<128x128xf32> -> vector<128x128xf32>
    %c0_9 = arith.constant 0 : index
    %c0_10 = arith.constant 0 : index
    %11 = vector.load %arg5[%c0_9, %c0_10] : memref<1x128xf32, #tpu.memory_space<vmem>>, vector<1x128xf32>
    %12 = vector.broadcast %11 : vector<1x128xf32> to vector<128x128xf32>
    %13 = arith.addf %10, %12 : vector<128x128xf32>
    %cst_11 = arith.constant 0.000000e+00 : f32
    %14 = vector.broadcast %cst_11 : f32 to vector<128x128xf32>
    %15 = arith.maximumf %13, %14 : vector<128x128xf32>
    %16 = arith.truncf %15 : vector<128x128xf32> to vector<128x128xbf16>
    %c0_12 = arith.constant 0 : index
    %c0_13 = arith.constant 0 : index
    %17 = vector.load %arg6[%c0_12, %c0_13] : memref<128x128xbf16, #tpu.memory_space<vmem>>, vector<128x128xbf16>
    %cst_14 = arith.constant dense<0.000000e+00> : vector<128x128xf32>
    %18 = tpu.matmul %16, %17, %cst_14 {dimension_numbers = #tpu.dot_dimension_numbers<[1], [0], [0], [1], [0, 0, 1, 1], [], []>} : vector<128x128xbf16>, vector<128x128xbf16>, vector<128x128xf32> -> vector<128x128xf32>
    %c0_15 = arith.constant 0 : index
    %c0_16 = arith.constant 0 : index
    %19 = vector.load %arg7[%c0_15, %c0_16] : memref<1x128xf32, #tpu.memory_space<vmem>>, vector<1x128xf32>
    %20 = vector.broadcast %19 : vector<1x128xf32> to vector<128x128xf32>
    %21 = arith.addf %18, %20 : vector<128x128xf32>
    %cst_17 = arith.constant 0.000000e+00 : f32
    %22 = vector.broadcast %cst_17 : f32 to vector<128x128xf32>
    %23 = arith.maximumf %21, %22 : vector<128x128xf32>
    %24 = arith.truncf %23 : vector<128x128xf32> to vector<128x128xbf16>
    %c0_18 = arith.constant 0 : index
    %c0_19 = arith.constant 0 : index
    %25 = vector.load %arg8[%c0_18, %c0_19] : memref<128x128xbf16, #tpu.memory_space<vmem>>, vector<128x128xbf16>
    %cst_20 = arith.constant dense<0.000000e+00> : vector<128x128xf32>
    %26 = tpu.matmul %24, %25, %cst_20 {dimension_numbers = #tpu.dot_dimension_numbers<[1], [0], [0], [1], [0, 0, 1, 1], [], []>} : vector<128x128xbf16>, vector<128x128xbf16>, vector<128x128xf32> -> vector<128x128xf32>
    %c0_21 = arith.constant 0 : index
    %c0_22 = arith.constant 0 : index
    %27 = vector.load %arg9[%c0_21, %c0_22] : memref<1x128xf32, #tpu.memory_space<vmem>>, vector<1x128xf32>
    %28 = vector.broadcast %27 : vector<1x128xf32> to vector<128x128xf32>
    %29 = arith.addf %26, %28 : vector<128x128xf32>
    %cst_23 = arith.constant 0.000000e+00 : f32
    %30 = vector.broadcast %cst_23 : f32 to vector<128x128xf32>
    %31 = arith.maximumf %29, %30 : vector<128x128xf32>
    %32 = arith.truncf %31 : vector<128x128xf32> to vector<128x128xbf16>
    %c0_24 = arith.constant 0 : index
    %c0_25 = arith.constant 0 : index
    %33 = vector.load %arg10[%c0_24, %c0_25] : memref<128x128xbf16, #tpu.memory_space<vmem>>, vector<128x128xbf16>
    %cst_26 = arith.constant dense<0.000000e+00> : vector<128x128xf32>
    %34 = tpu.matmul %32, %33, %cst_26 {dimension_numbers = #tpu.dot_dimension_numbers<[1], [0], [0], [1], [0, 0, 1, 1], [], []>} : vector<128x128xbf16>, vector<128x128xbf16>, vector<128x128xf32> -> vector<128x128xf32>
    %c0_27 = arith.constant 0 : index
    %c0_28 = arith.constant 0 : index
    %35 = vector.load %arg11[%c0_27, %c0_28] : memref<1x128xf32, #tpu.memory_space<vmem>>, vector<1x128xf32>
    %36 = vector.broadcast %35 : vector<1x128xf32> to vector<128x128xf32>
    %37 = arith.addf %34, %36 : vector<128x128xf32>
    %cst_29 = arith.constant dense<0xFF800000> : vector<128xf32>
    %38 = vector.multi_reduction <maximumf>, %37, %cst_29 [1] : vector<128x128xf32> to vector<128xf32>
    %39 = vector.shape_cast %38 : vector<128xf32> to vector<128x1xf32>
    %40 = vector.broadcast %39 : vector<128x1xf32> to vector<128x128xf32>
    %41 = arith.subf %37, %40 : vector<128x128xf32>
    %42 = math.exp %41 : vector<128x128xf32>
    %cst_30 = arith.constant dense<0.000000e+00> : vector<128xf32>
    %43 = vector.multi_reduction <add>, %42, %cst_30 [1] : vector<128x128xf32> to vector<128xf32>
    %44 = vector.shape_cast %43 : vector<128xf32> to vector<128x1xf32>
    %45 = tpu.reciprocal %44 {approx = true} : vector<128x1xf32> -> vector<128x1xf32>
    %46 = vector.broadcast %45 : vector<128x1xf32> to vector<128x128xf32>
    %47 = arith.mulf %42, %46 : vector<128x128xf32>
    %c0_31 = arith.constant 0 : index
    %c0_32 = arith.constant 0 : index
    %48 = vector.load %arg16[%c0_31, %c0_32] : memref<128x128xf32, #tpu.memory_space<vmem>>, vector<128x128xf32>
    tpu.vector_store %arg16[%c0_31, %c0_32], %47 {strides = array<i32>} : memref<128x128xf32, #tpu.memory_space<vmem>>, vector<128x128xf32>,
    %c0_33 = arith.constant 0 : index
    %c0_34 = arith.constant 0 : index
    %49 = vector.load %arg12[%c0_33, %c0_34] : memref<128x128xbf16, #tpu.memory_space<vmem>>, vector<128x128xbf16>
    %cst_35 = arith.constant dense<0.000000e+00> : vector<128x128xf32>
    %50 = tpu.matmul %32, %49, %cst_35 {dimension_numbers = #tpu.dot_dimension_numbers<[1], [0], [0], [1], [0, 0, 1, 1], [], []>} : vector<128x128xbf16>, vector<128x128xbf16>, vector<128x128xf32> -> vector<128x128xf32>
    %c0_36 = arith.constant 0 : index
    %c0_37 = arith.constant 0 : index
    %51 = vector.load %arg13[%c0_36, %c0_37] : memref<1x128xf32, #tpu.memory_space<vmem>>, vector<1x128xf32>
    %52 = vector.broadcast %51 : vector<1x128xf32> to vector<128x128xf32>
    %53 = arith.addf %50, %52 : vector<128x128xf32>
    %cst_38 = arith.constant 0.000000e+00 : f32
    %54 = vector.broadcast %cst_38 : f32 to vector<128x128xf32>
    %55 = arith.maximumf %53, %54 : vector<128x128xf32>
    %c0_39 = arith.constant 0 : index
    %c0_40 = arith.constant 0 : index
    %56 = vector.load %arg14[%c0_39, %c0_40] : memref<1x128xf32, #tpu.memory_space<vmem>>, vector<1x128xf32>
    %57 = vector.broadcast %56 : vector<1x128xf32> to vector<128x128xf32>
    %58 = arith.mulf %55, %57 : vector<128x128xf32>
    %cst_41 = arith.constant dense<0.000000e+00> : vector<128xf32>
    %59 = vector.multi_reduction <add>, %58, %cst_41 [1] : vector<128x128xf32> to vector<128xf32>
    %60 = vector.shape_cast %59 : vector<128xf32> to vector<128x1xf32>
    %c0_42 = arith.constant 0 : index
    %c0_43 = arith.constant 0 : index
    %61 = vector.load %arg15[%c0_42, %c0_43] : memref<1x1xf32, #tpu.memory_space<vmem>>, vector<1x1xf32>
    %62 = vector.broadcast %61 : vector<1x1xf32> to vector<128x1xf32>
    %63 = arith.addf %60, %62 : vector<128x1xf32>
    %64 = vector.shape_cast %63 : vector<128x1xf32> to vector<128x1xf32>
    %65 = vector.broadcast %64 : vector<128x1xf32> to vector<128x128xf32>
    %c0_44 = arith.constant 0 : index
    %c0_45 = arith.constant 0 : index
    %66 = vector.load %arg17[%c0_44, %c0_45] : memref<128x128xf32, #tpu.memory_space<vmem>>, vector<128x128xf32>
    tpu.vector_store %arg17[%c0_44, %c0_45], %65 {strides = array<i32>} : memref<128x128xf32, #tpu.memory_space<vmem>>, vector<128x128xf32>,
    return
  }
  func.func @transform_0(%arg0: i32) -> (i32, i32) {
    %c0_i32 = arith.constant 0 : i32
    %c0_i32_0 = arith.constant 0 : i32
    return %arg0, %c0_i32 : i32, i32
  }
  func.func @transform_1(%arg0: i32) -> (i32, i32) {
    %c0_i32 = arith.constant 0 : i32
    %c0_i32_0 = arith.constant 0 : i32
    %c0_i32_1 = arith.constant 0 : i32
    return %c0_i32, %c0_i32_0 : i32, i32
  }
  func.func @transform_2(%arg0: i32) -> (i32, i32) {
    %c0_i32 = arith.constant 0 : i32
    %c0_i32_0 = arith.constant 0 : i32
    %c0_i32_1 = arith.constant 0 : i32
    return %c0_i32, %c0_i32_0 : i32, i32
  }
  func.func @transform_3(%arg0: i32) -> (i32, i32) {
    %c0_i32 = arith.constant 0 : i32
    %c0_i32_0 = arith.constant 0 : i32
    %c0_i32_1 = arith.constant 0 : i32
    return %c0_i32, %c0_i32_0 : i32, i32
  }
  func.func @transform_4(%arg0: i32) -> (i32, i32) {
    %c0_i32 = arith.constant 0 : i32
    %c0_i32_0 = arith.constant 0 : i32
    %c0_i32_1 = arith.constant 0 : i32
    return %c0_i32, %c0_i32_0 : i32, i32
  }
  func.func @transform_5(%arg0: i32) -> (i32, i32) {
    %c0_i32 = arith.constant 0 : i32
    %c0_i32_0 = arith.constant 0 : i32
    %c0_i32_1 = arith.constant 0 : i32
    return %c0_i32, %c0_i32_0 : i32, i32
  }
  func.func @transform_6(%arg0: i32) -> (i32, i32) {
    %c0_i32 = arith.constant 0 : i32
    %c0_i32_0 = arith.constant 0 : i32
    %c0_i32_1 = arith.constant 0 : i32
    return %c0_i32, %c0_i32_0 : i32, i32
  }
  func.func @transform_7(%arg0: i32) -> (i32, i32) {
    %c0_i32 = arith.constant 0 : i32
    %c0_i32_0 = arith.constant 0 : i32
    %c0_i32_1 = arith.constant 0 : i32
    return %c0_i32, %c0_i32_0 : i32, i32
  }
  func.func @transform_8(%arg0: i32) -> (i32, i32) {
    %c0_i32 = arith.constant 0 : i32
    %c0_i32_0 = arith.constant 0 : i32
    %c0_i32_1 = arith.constant 0 : i32
    return %c0_i32, %c0_i32_0 : i32, i32
  }
  func.func @transform_9(%arg0: i32) -> (i32, i32) {
    %c0_i32 = arith.constant 0 : i32
    %c0_i32_0 = arith.constant 0 : i32
    %c0_i32_1 = arith.constant 0 : i32
    return %c0_i32, %c0_i32_0 : i32, i32
  }
  func.func @transform_10(%arg0: i32) -> (i32, i32) {
    %c0_i32 = arith.constant 0 : i32
    %c0_i32_0 = arith.constant 0 : i32
    %c0_i32_1 = arith.constant 0 : i32
    return %c0_i32, %c0_i32_0 : i32, i32
  }
  func.func @transform_11(%arg0: i32) -> (i32, i32) {
    %c0_i32 = arith.constant 0 : i32
    %c0_i32_0 = arith.constant 0 : i32
    %c0_i32_1 = arith.constant 0 : i32
    return %c0_i32, %c0_i32_0 : i32, i32
  }
  func.func @transform_12(%arg0: i32) -> (i32, i32) {
    %c0_i32 = arith.constant 0 : i32
    %c0_i32_0 = arith.constant 0 : i32
    %c0_i32_1 = arith.constant 0 : i32
    return %c0_i32, %c0_i32_0 : i32, i32
  }
  func.func @transform_13(%arg0: i32) -> (i32, i32) {
    %c0_i32 = arith.constant 0 : i32
    %c0_i32_0 = arith.constant 0 : i32
    %c0_i32_1 = arith.constant 0 : i32
    return %c0_i32, %c0_i32_0 : i32, i32
  }
  func.func @transform_14(%arg0: i32) -> (i32, i32) {
    %c0_i32 = arith.constant 0 : i32
    %c0_i32_0 = arith.constant 0 : i32
    %c0_i32_1 = arith.constant 0 : i32
    return %c0_i32, %c0_i32_0 : i32, i32
  }
  func.func @transform_15(%arg0: i32) -> (i32, i32) {
    %c0_i32 = arith.constant 0 : i32
    %c0_i32_0 = arith.constant 0 : i32
    return %arg0, %c0_i32 : i32, i32
  }
  func.func @transform_16(%arg0: i32) -> (i32, i32) {
    %c0_i32 = arith.constant 0 : i32
    %c0_i32_0 = arith.constant 0 : i32
    return %arg0, %c0_i32 : i32, i32
  }
}

</mosaic_0001>

<llo_original>
// kernel: grid2op_model_forward.1
$region0: #{grid2op_model_forward.1}
  #allocation0 [shape = 'u32[]', space=smem, size = 0x4, offset = 0x4, fixed_abs, tag = 'smem constant byte address 0x4 - core index']
  #allocation1 [shape = 'u32[72,128]{1,0:T(1,128)}', space=vmem, size = 0x9000, scoped, tag = 'internal scratch']
  #allocation2 [shape = 'f32[1,1]{1,0:T(1,128)S(1)}', space=vmem, size = 0x200, scoped, tag = 'scoped memory for grid2op_model_forward.1']
  %s0 = inlined_call_operand.vmem [shape: bf16[128,128], index: 0, kind: input, shape index: {}]
  %s1 = inlined_call_operand.vmem [shape: bf16[128,128], index: 1, kind: input, shape index: {}]
  %s2 = inlined_call_operand.vmem [shape: f32[1,128], index: 2, kind: input, shape index: {}]
  %s3 = inlined_call_operand.hbm [shape: bf16[128,128], index: 3, kind: input, shape index: {}]
  %s4 = inlined_call_operand.vmem [shape: f32[1,128], index: 4, kind: input, shape index: {}]
  %s5 = inlined_call_operand.hbm [shape: bf16[128,128], index: 5, kind: input, shape index: {}]
  %s6 = inlined_call_operand.vmem [shape: f32[1,128], index: 6, kind: input, shape index: {}]
  %s7 = inlined_call_operand.hbm [shape: bf16[128,128], index: 7, kind: input, shape index: {}]
  %s8 = inlined_call_operand.vmem [shape: f32[1,128], index: 8, kind: input, shape index: {}]
  %s9 = inlined_call_operand.hbm [shape: bf16[128,128], index: 9, kind: input, shape index: {}]
  %s10 = inlined_call_operand.vmem [shape: f32[1,128], index: 10, kind: input, shape index: {}]
  %s11 = inlined_call_operand.hbm [shape: bf16[128,128], index: 11, kind: input, shape index: {}]
  %s12 = inlined_call_operand.vmem [shape: f32[1,128], index: 12, kind: input, shape index: {}]
  %s13 = inlined_call_operand.vmem [shape: f32[1,128], index: 13, kind: input, shape index: {}]
  %s14 = inlined_call_operand.<no memory space> [shape: f32[1,1], index: 14, kind: input, shape index: {}]
  %s15 = inlined_call_operand.vmem [shape: f32[128,128], index: 15, kind: output, shape index: {0}]
  %s16 = inlined_call_operand.vmem [shape: f32[128,128], index: 16, kind: output, shape index: {1}]
  %17 = xla_tuple %s15, %s16
  %s18 = sld [smem:[#allocation0]]
  $region98: #{grid2op_model_forward.1} parent=0
    _
  %s20 = ssub.s32 1, %s18
  %s21 = scalar_select 0, %s20, %s18
  %v22 = vstv %s14
  %23 = vst [vmem:[#allocation2] sm:$0x1] %v22
  $region1: #{grid2op_model_forward.1} parent=0
    #allocation3 [shape = 'u8[32768]{0}', space=vmem, size = 0x8000, scoped, tag = 'input window, operand 3, single buffered']
    #allocation4 [shape = 's32[1]{0}', space=sflag, size = 0x4, scoped, tag = 'scoped memory for grid2op_model_forward.1']
    #allocation5 [shape = 'u8[32768]{0}', space=vmem, size = 0x8000, scoped, tag = 'input window, operand 5, single buffered']
    #allocation6 [shape = 's32[1]{0}', space=sflag, size = 0x4, scoped, tag = 'scoped memory for grid2op_model_forward.1']
    #allocation7 [shape = 'u8[32768]{0}', space=vmem, size = 0x8000, scoped, tag = 'input window, operand 7, single buffered']
    #allocation8 [shape = 'u8[32768]{0}', space=vmem, size = 0x8000, scoped, tag = 'input window, operand 9, single buffered']
    #allocation9 [shape = 's32[1]{0}', space=sflag, size = 0x4, scoped, tag = 'scoped memory for grid2op_model_forward.1']
    #allocation10 [shape = 'u8[32768]{0}', space=vmem, size = 0x8000, scoped, tag = 'input window, operand 11, single buffered']
    %24 = vsyncpa [#allocation4], 0
    %25 = vsyncpa [#allocation6], 0
    %26 = vsyncpa [#allocation9], 0
    // Predicated region
    $region2: #{grid2op_model_forward.1} parent=1 // pred_check
      _
    $region3: #{grid2op_model_forward.1} parent=1 // pred_check_branch
      %28 = sbr.rel (0) target = $region5
    $region4: #{grid2op_model_forward.1} parent=1 // pred_region
      _
    $region5: #{grid2op_model_forward.1} parent=1 // pred_fallthru
      _
    // Predicated region
    $region6: #{grid2op_model_forward.1} parent=1 // pred_check
      _
    $region7: #{grid2op_model_forward.1} parent=1 // pred_check_branch
      %30 = sbr.rel (0) target = $region9
    $region8: #{grid2op_model_forward.1} parent=1 // pred_region
      _
    $region9: #{grid2op_model_forward.1} parent=1 // pred_fallthru
      _
    // Predicated region
    $region10: #{grid2op_model_forward.1} parent=1 // pred_check
      _
    $region11: #{grid2op_model_forward.1} parent=1 // pred_check_branch
      %32 = sbr.rel (0) target = $region13
    $region12: #{grid2op_model_forward.1} parent=1 // pred_region
      _
    $region13: #{grid2op_model_forward.1} parent=1 // pred_fallthru
      _
    // Predicated region
    $region14: #{grid2op_model_forward.1} parent=1 // pred_check
      _
    $region15: #{grid2op_model_forward.1} parent=1 // pred_check_branch
      %34 = sbr.rel (0) target = $region17
    $region16: #{grid2op_model_forward.1} parent=1 // pred_region
      %36 = vsyncadd [#allocation4], 0
      %s37 = sshll.u32 %s3, 4
      %s38 = int_to_ptr.hbm [resolvable:$true] %s37
      %s39 = sshll.u32 [#allocation3], 4
      %s40 = int_to_ptr.vmem [resolvable:$true] %s39
      %45 = dma.hbm_to_vmem [thread:$0]  %s38, 1024, %s40, [#allocation4], 64, 64, 4
    $region17: #{grid2op_model_forward.1} parent=1 // pred_fallthru
      _
    // Predicated region
    $region18: #{grid2op_model_forward.1} parent=1 // pred_check
      _
    $region19: #{grid2op_model_forward.1} parent=1 // pred_check_branch
      %47 = sbr.rel (0) target = $region21
    $region20: #{grid2op_model_forward.1} parent=1 // pred_region
      _
    $region21: #{grid2op_model_forward.1} parent=1 // pred_fallthru
      _
    // Predicated region
    $region22: #{grid2op_model_forward.1} parent=1 // pred_check
      _
    $region23: #{grid2op_model_forward.1} parent=1 // pred_check_branch
      %49 = sbr.rel (0) target = $region25
    $region24: #{grid2op_model_forward.1} parent=1 // pred_region
      %51 = vsyncadd [#allocation6], 0
      %s52 = sshll.u32 %s5, 4
      %s53 = int_to_ptr.hbm [resolvable:$true] %s52
      %s54 = sshll.u32 [#allocation5], 4
      %s55 = int_to_ptr.vmem [resolvable:$true] %s54
      %60 = dma.hbm_to_vmem [thread:$0]  %s53, 1024, %s55, [#allocation6], 64, 64, 4
    $region25: #{grid2op_model_forward.1} parent=1 // pred_fallthru
      _
    // Predicated region
    $region26: #{grid2op_model_forward.1} parent=1 // pred_check
      _
    $region27: #{grid2op_model_forward.1} parent=1 // pred_check_branch
      %62 = sbr.rel (0) target = $region29
    $region28: #{grid2op_model_forward.1} parent=1 // pred_region
      _
    $region29: #{grid2op_model_forward.1} parent=1 // pred_fallthru
      _
    // Predicated region
    $region30: #{grid2op_model_forward.1} parent=1 // pred_check
      _
    $region31: #{grid2op_model_forward.1} parent=1 // pred_check_branch
      %64 = sbr.rel (0) target = $region33
    $region32: #{grid2op_model_forward.1} parent=1 // pred_region
      %66 = vsyncadd [#allocation6], 0
      %s67 = sshll.u32 %s7, 4
      %s68 = int_to_ptr.hbm [resolvable:$true] %s67
      %s69 = sshll.u32 [#allocation7], 4
      %s70 = int_to_ptr.vmem [resolvable:$true] %s69
      %75 = dma.hbm_to_vmem [thread:$0]  %s68, 1024, %s70, [#allocation6], 64, 64, 4
    $region33: #{grid2op_model_forward.1} parent=1 // pred_fallthru
      _
    // Predicated region
    $region34: #{grid2op_model_forward.1} parent=1 // pred_check
      _
    $region35: #{grid2op_model_forward.1} parent=1 // pred_check_branch
      %77 = sbr.rel (0) target = $region37
    $region36: #{grid2op_model_forward.1} parent=1 // pred_region
      _
    $region37: #{grid2op_model_forward.1} parent=1 // pred_fallthru
      _
    // Predicated region
    $region38: #{grid2op_model_forward.1} parent=1 // pred_check
      _
    $region39: #{grid2op_model_forward.1} parent=1 // pred_check_branch
      %79 = sbr.rel (0) target = $region41
    $region40: #{grid2op_model_forward.1} parent=1 // pred_region
      %81 = vsyncadd [#allocation9], 0
      %s82 = sshll.u32 %s9, 4
      %s83 = int_to_ptr.hbm [resolvable:$true] %s82
      %s84 = sshll.u32 [#allocation8], 4
      %s85 = int_to_ptr.vmem [resolvable:$true] %s84
      %90 = dma.hbm_to_vmem [thread:$0]  %s83, 1024, %s85, [#allocation9], 64, 64, 4
    $region41: #{grid2op_model_forward.1} parent=1 // pred_fallthru
      _
    // Predicated region
    $region42: #{grid2op_model_forward.1} parent=1 // pred_check
      _
    $region43: #{grid2op_model_forward.1} parent=1 // pred_check_branch
      %92 = sbr.rel (0) target = $region45
    $region44: #{grid2op_model_forward.1} parent=1 // pred_region
      _
    $region45: #{grid2op_model_forward.1} parent=1 // pred_fallthru
      _
    // Predicated region
    $region46: #{grid2op_model_forward.1} parent=1 // pred_check
      _
    $region47: #{grid2op_model_forward.1} parent=1 // pred_check_branch
      %94 = sbr.rel (0) target = $region49
    $region48: #{grid2op_model_forward.1} parent=1 // pred_region
      %96 = vsyncadd [#allocation9], 0
      %s97 = sshll.u32 %s11, 4
      %s98 = int_to_ptr.hbm [resolvable:$true] %s97
      %s99 = sshll.u32 [#allocation10], 4
      %s100 = int_to_ptr.vmem [resolvable:$true] %s99
      %105 = dma.hbm_to_vmem [thread:$0]  %s98, 1024, %s100, [#allocation9], 64, 64, 4
    $region49: #{grid2op_model_forward.1} parent=1 // pred_fallthru
      _
    // Predicated region
    $region50: #{grid2op_model_forward.1} parent=1 // pred_check
      _
    $region51: #{grid2op_model_forward.1} parent=1 // pred_check_branch
      %107 = sbr.rel (0) target = $region53
    $region52: #{grid2op_model_forward.1} parent=1 // pred_region
      _
    $region53: #{grid2op_model_forward.1} parent=1 // pred_fallthru
      _
    // Predicated region
    $region54: #{grid2op_model_forward.1} parent=1 // pred_check
      _
    $region55: #{grid2op_model_forward.1} parent=1 // pred_check_branch
      %109 = sbr.rel (0) target = $region57
    $region56: #{grid2op_model_forward.1} parent=1 // pred_region
      _
    $region57: #{grid2op_model_forward.1} parent=1 // pred_fallthru
      _
    // Predicated region
    $region58: #{grid2op_model_forward.1} parent=1 // pred_check
      _
    $region59: #{grid2op_model_forward.1} parent=1 // pred_check_branch
      %111 = sbr.rel (0) target = $region61
    $region60: #{grid2op_model_forward.1} parent=1 // pred_region
      _
    $region61: #{grid2op_model_forward.1} parent=1 // pred_fallthru
      _
    // Predicated region
    $region62: #{grid2op_model_forward.1} parent=1 // pred_check
      _
    $region63: #{grid2op_model_forward.1} parent=1 // pred_check_branch
      %113 = sbr.rel (0) target = $region65
    $region64: #{grid2op_model_forward.1} parent=1 // pred_region
      %115 = dma.done [#allocation4], 1024
    $region65: #{grid2op_model_forward.1} parent=1 // pred_fallthru
      _
    // Predicated region
    $region66: #{grid2op_model_forward.1} parent=1 // pred_check
      _
    $region67: #{grid2op_model_forward.1} parent=1 // pred_check_branch
      %117 = sbr.rel (0) target = $region69
    $region68: #{grid2op_model_forward.1} parent=1 // pred_region
      %119 = dma.done [#allocation6], 1024
    $region69: #{grid2op_model_forward.1} parent=1 // pred_fallthru
      _
    // Predicated region
    $region70: #{grid2op_model_forward.1} parent=1 // pred_check
      _
    $region71: #{grid2op_model_forward.1} parent=1 // pred_check_branch
      %121 = sbr.rel (0) target = $region73
    $region72: #{grid2op_model_forward.1} parent=1 // pred_region
      %123 = dma.done [#allocation6], 1024
    $region73: #{grid2op_model_forward.1} parent=1 // pred_fallthru
      _
    // Predicated region
    $region74: #{grid2op_model_forward.1} parent=1 // pred_check
      _
    $region75: #{grid2op_model_forward.1} parent=1 // pred_check_branch
      %125 = sbr.rel (0) target = $region77
    $region76: #{grid2op_model_forward.1} parent=1 // pred_region
      %127 = dma.done [#allocation9], 1024
    $region77: #{grid2op_model_forward.1} parent=1 // pred_fallthru
      _
    // Predicated region
    $region78: #{grid2op_model_forward.1} parent=1 // pred_check
      _
    $region79: #{grid2op_model_forward.1} parent=1 // pred_check_branch
      %129 = sbr.rel (0) target = $region81
    $region80: #{grid2op_model_forward.1} parent=1 // pred_region
      %131 = dma.done [#allocation9], 1024
    $region81: #{grid2op_model_forward.1} parent=1 // pred_fallthru
      _
    %v132 = vld [vmem:[%s0] sm:$0xf]
    %v133 = vld [vmem:[%s0 + $0x4] sm:$0xf]
    %v134 = vld [vmem:[%s0 + $0x8] sm:$0xf]
    %v135 = vld [vmem:[%s0 + $0xc] sm:$0xf]
    %v136 = vld [vmem:[%s0 + $0x10] sm:$0xf]
    %v137 = vld [vmem:[%s0 + $0x14] sm:$0xf]
    %v138 = vld [vmem:[%s0 + $0x18] sm:$0xf]
    %v139 = vld [vmem:[%s0 + $0x1c] sm:$0xf]
    %v140 = vld [vmem:[%s0 + $0x20] sm:$0xf]
    %v141 = vld [vmem:[%s0 + $0x24] sm:$0xf]
    %v142 = vld [vmem:[%s0 + $0x28] sm:$0xf]
    %v143 = vld [vmem:[%s0 + $0x2c] sm:$0xf]
    %v144 = vld [vmem:[%s0 + $0x30] sm:$0xf]
    %v145 = vld [vmem:[%s0 + $0x34] sm:$0xf]
    %v146 = vld [vmem:[%s0 + $0x38] sm:$0xf]
    %v147 = vld [vmem:[%s0 + $0x3c] sm:$0xf]
    %v148 = vld [vmem:[%s1] sm:$0xf]
    %v149 = vld [vmem:[%s1 + $0x4] sm:$0xf]
    %v150 = vld [vmem:[%s1 + $0x8] sm:$0xf]
    %v151 = vld [vmem:[%s1 + $0xc] sm:$0xf]
    %v152 = vld [vmem:[%s1 + $0x10] sm:$0xf]
    %v153 = vld [vmem:[%s1 + $0x14] sm:$0xf]
    %v154 = vld [vmem:[%s1 + $0x18] sm:$0xf]
    %v155 = vld [vmem:[%s1 + $0x1c] sm:$0xf]
    %v156 = vld [vmem:[%s1 + $0x20] sm:$0xf]
    %v157 = vld [vmem:[%s1 + $0x24] sm:$0xf]
    %v158 = vld [vmem:[%s1 + $0x28] sm:$0xf]
    %v159 = vld [vmem:[%s1 + $0x2c] sm:$0xf]
    %v160 = vld [vmem:[%s1 + $0x30] sm:$0xf]
    %v161 = vld [vmem:[%s1 + $0x34] sm:$0xf]
    %v162 = vld [vmem:[%s1 + $0x38] sm:$0xf]
    %v163 = vld [vmem:[%s1 + $0x3c] sm:$0xf]
    %v164 = vld [vmem:[%s2] sm:$0x1]
    %v166 = vperm.slane %v164, 0
    %v184 = vunpack.c.l.b16 %v132
    %v185 = vunpack.c.l.b16 %v133
    %v186 = vunpack.c.l.b16 %v134
    %v187 = vunpack.c.l.b16 %v135
    %v188 = vunpack.c.l.b16 %v136
    %v189 = vunpack.c.l.b16 %v137
    %v190 = vunpack.c.l.b16 %v138
    %v191 = vunpack.c.l.b16 %v139
    %v192 = vunpack.c.l.b16 %v140
    %v193 = vunpack.c.l.b16 %v141
    %v194 = vunpack.c.l.b16 %v142
    %v195 = vunpack.c.l.b16 %v143
    %v196 = vunpack.c.l.b16 %v144
    %v197 = vunpack.c.l.b16 %v145
    %v198 = vunpack.c.l.b16 %v146
    %v199 = vunpack.c.l.b16 %v147
    %v200 = vpack.c.b16 %v185, %v184
    %v201 = vpack.c.b16 %v187, %v186
    %v202 = vpack.c.b16 %v189, %v188
    %v203 = vpack.c.b16 %v191, %v190
    %v204 = vpack.c.b16 %v193, %v192
    %v205 = vpack.c.b16 %v195, %v194
    %v206 = vpack.c.b16 %v197, %v196
    %v207 = vpack.c.b16 %v199, %v198
    %v232 = vunpack.c.l.b16 %v148
    %v233 = vunpack.c.l.b16 %v149
    %v234 = vunpack.c.l.b16 %v150
    %v235 = vunpack.c.l.b16 %v151
    %v236 = vunpack.c.l.b16 %v152
    %v237 = vunpack.c.l.b16 %v153
    %v238 = vunpack.c.l.b16 %v154
    %v239 = vunpack.c.l.b16 %v155
    %v240 = vunpack.c.l.b16 %v156
    %v241 = vunpack.c.l.b16 %v157
    %v242 = vunpack.c.l.b16 %v158
    %v243 = vunpack.c.l.b16 %v159
    %v244 = vunpack.c.l.b16 %v160
    %v245 = vunpack.c.l.b16 %v161
    %v246 = vunpack.c.l.b16 %v162
    %v247 = vunpack.c.l.b16 %v163
    %v248 = vpack.c.b16 %v233, %v232
    %v249 = vpack.c.b16 %v235, %v234
    %v250 = vpack.c.b16 %v237, %v236
    %v251 = vpack.c.b16 %v239, %v238
    %v252 = vpack.c.b16 %v241, %v240
    %v253 = vpack.c.b16 %v243, %v242
    %v254 = vpack.c.b16 %v245, %v244
    %v255 = vpack.c.b16 %v247, %v246
    %264 = vmatpush.bf16.msra.mxu0 %v255
    %265 = vmatpush.bf16.msra.mxu0 %v254
    %266 = vmatpush.bf16.msra.mxu0 %v253
    %267 = vmatpush.bf16.msra.mxu0 %v252
    %268 = vmatpush.bf16.msra.mxu0 %v251
    %269 = vmatpush.bf16.msra.mxu0 %v250
    %270 = vmatpush.bf16.msra.mxu0 %v249
    %271 = vmatpush.bf16.msra.mxu0 %v248
    %272 = vmatmul.bf16.gmra.mxu0 %v200
    %v273 = vpop.f32.mrf.mxu0
    %v274 = vadd.f32 %v166, %v273
    %v275 = vpop.f32.mrf.mxu0
    %v276 = vadd.f32 %v166, %v275
    %277 = vmatmul.bf16.gmra.mxu0 %v201
    %v278 = vpop.f32.mrf.mxu0
    %v279 = vadd.f32 %v166, %v278
    %v280 = vpop.f32.mrf.mxu0
    %v281 = vadd.f32 %v166, %v280
    %282 = vmatmul.bf16.gmra.mxu0 %v202
    %v283 = vpop.f32.mrf.mxu0
    %v284 = vadd.f32 %v166, %v283
    %v285 = vpop.f32.mrf.mxu0
    %v286 = vadd.f32 %v166, %v285
    %287 = vmatmul.bf16.gmra.mxu0 %v203
    %v288 = vpop.f32.mrf.mxu0
    %v289 = vadd.f32 %v166, %v288
    %v290 = vpop.f32.mrf.mxu0
    %v291 = vadd.f32 %v166, %v290
    %292 = vmatmul.bf16.gmra.mxu0 %v204
    %v293 = vpop.f32.mrf.mxu0
    %v294 = vadd.f32 %v166, %v293
    %v295 = vpop.f32.mrf.mxu0
    %v296 = vadd.f32 %v166, %v295
    %297 = vmatmul.bf16.gmra.mxu0 %v205
    %v298 = vpop.f32.mrf.mxu0
    %v299 = vadd.f32 %v166, %v298
    %v300 = vpop.f32.mrf.mxu0
    %v301 = vadd.f32 %v166, %v300
    %302 = vmatmul.bf16.gmra.mxu0 %v206
    %v303 = vpop.f32.mrf.mxu0
    %v304 = vadd.f32 %v166, %v303
    %v305 = vpop.f32.mrf.mxu0
    %v306 = vadd.f32 %v166, %v305
    %307 = vmatmul.bf16.gmra.mxu0 %v207
    %v308 = vpop.f32.mrf.mxu0
    %v309 = vadd.f32 %v166, %v308
    %v310 = vpop.f32.mrf.mxu0
    %v311 = vadd.f32 %v166, %v310
    %312 = vdwg.mxu0
    %v313 = vmax.f32 %v274, 0.0
    %v314 = vmax.f32 %v276, 0.0
    %v315 = vmax.f32 %v279, 0.0
    %v316 = vmax.f32 %v281, 0.0
    %v317 = vmax.f32 %v284, 0.0
    %v318 = vmax.f32 %v286, 0.0
    %v319 = vmax.f32 %v289, 0.0
    %v320 = vmax.f32 %v291, 0.0
    %v321 = vmax.f32 %v294, 0.0
    %v322 = vmax.f32 %v296, 0.0
    %v323 = vmax.f32 %v299, 0.0
    %v324 = vmax.f32 %v301, 0.0
    %v325 = vmax.f32 %v304, 0.0
    %v326 = vmax.f32 %v306, 0.0
    %v327 = vmax.f32 %v309, 0.0
    %v328 = vmax.f32 %v311, 0.0
    %v329 = vpack.c.bf16 %v314, %v313
    %v330 = vpack.c.bf16 %v316, %v315
    %v331 = vpack.c.bf16 %v318, %v317
    %v332 = vpack.c.bf16 %v320, %v319
    %v333 = vpack.c.bf16 %v322, %v321
    %v334 = vpack.c.bf16 %v324, %v323
    %v335 = vpack.c.bf16 %v326, %v325
    %v336 = vpack.c.bf16 %v328, %v327
    %v337 = vld [vmem:[#allocation3] sm:$0xf]
    %v338 = vld [vmem:[#allocation3 + $0x4] sm:$0xf]
    %v339 = vld [vmem:[#allocation3 + $0x8] sm:$0xf]
    %v340 = vld [vmem:[#allocation3 + $0xc] sm:$0xf]
    %v341 = vld [vmem:[#allocation3 + $0x10] sm:$0xf]
    %v342 = vld [vmem:[#allocation3 + $0x14] sm:$0xf]
    %v343 = vld [vmem:[#allocation3 + $0x18] sm:$0xf]
    %v344 = vld [vmem:[#allocation3 + $0x1c] sm:$0xf]
    %v345 = vld [vmem:[#allocation3 + $0x20] sm:$0xf]
    %v346 = vld [vmem:[#allocation3 + $0x24] sm:$0xf]
    %v347 = vld [vmem:[#allocation3 + $0x28] sm:$0xf]
    %v348 = vld [vmem:[#allocation3 + $0x2c] sm:$0xf]
    %v349 = vld [vmem:[#allocation3 + $0x30] sm:$0xf]
    %v350 = vld [vmem:[#allocation3 + $0x34] sm:$0xf]
    %v351 = vld [vmem:[#allocation3 + $0x38] sm:$0xf]
    %v352 = vld [vmem:[#allocation3 + $0x3c] sm:$0xf]
    %v353 = vld [vmem:[%s4] sm:$0x1]
    %v355 = vperm.slane %v353, 0
    %v373 = vunpack.c.l.b16 %v337
    %v374 = vunpack.c.l.b16 %v338
    %v375 = vunpack.c.l.b16 %v339
    %v376 = vunpack.c.l.b16 %v340
    %v377 = vunpack.c.l.b16 %v341
    %v378 = vunpack.c.l.b16 %v342
    %v379 = vunpack.c.l.b16 %v343
    %v380 = vunpack.c.l.b16 %v344
    %v381 = vunpack.c.l.b16 %v345
    %v382 = vunpack.c.l.b16 %v346
    %v383 = vunpack.c.l.b16 %v347
    %v384 = vunpack.c.l.b16 %v348
    %v385 = vunpack.c.l.b16 %v349
    %v386 = vunpack.c.l.b16 %v350
    %v387 = vunpack.c.l.b16 %v351
    %v388 = vunpack.c.l.b16 %v352
    %v389 = vpack.c.b16 %v374, %v373
    %v390 = vpack.c.b16 %v376, %v375
    %v391 = vpack.c.b16 %v378, %v377
    %v392 = vpack.c.b16 %v380, %v379
    %v393 = vpack.c.b16 %v382, %v381
    %v394 = vpack.c.b16 %v384, %v383
    %v395 = vpack.c.b16 %v386, %v385
    %v396 = vpack.c.b16 %v388, %v387
    %405 = vmatpush.bf16.msra.mxu0 %v396
    %406 = vmatpush.bf16.msra.mxu0 %v395
    %407 = vmatpush.bf16.msra.mxu0 %v394
    %408 = vmatpush.bf16.msra.mxu0 %v393
    %409 = vmatpush.bf16.msra.mxu0 %v392
    %410 = vmatpush.bf16.msra.mxu0 %v391
    %411 = vmatpush.bf16.msra.mxu0 %v390
    %412 = vmatpush.bf16.msra.mxu0 %v389
    %413 = vmatmul.bf16.gmra.mxu0 %v329
    %v414 = vpop.f32.mrf.mxu0
    %v415 = vadd.f32 %v355, %v414
    %v416 = vpop.f32.mrf.mxu0
    %v417 = vadd.f32 %v355, %v416
    %418 = vmatmul.bf16.gmra.mxu0 %v330
    %v419 = vpop.f32.mrf.mxu0
    %v420 = vadd.f32 %v355, %v419
    %v421 = vpop.f32.mrf.mxu0
    %v422 = vadd.f32 %v355, %v421
    %423 = vmatmul.bf16.gmra.mxu0 %v331
    %v424 = vpop.f32.mrf.mxu0
    %v425 = vadd.f32 %v355, %v424
    %v426 = vpop.f32.mrf.mxu0
    %v427 = vadd.f32 %v355, %v426
    %428 = vmatmul.bf16.gmra.mxu0 %v332
    %v429 = vpop.f32.mrf.mxu0
    %v430 = vadd.f32 %v355, %v429
    %v431 = vpop.f32.mrf.mxu0
    %v432 = vadd.f32 %v355, %v431
    %433 = vmatmul.bf16.gmra.mxu0 %v333
    %v434 = vpop.f32.mrf.mxu0
    %v435 = vadd.f32 %v355, %v434
    %v436 = vpop.f32.mrf.mxu0
    %v437 = vadd.f32 %v355, %v436
    %438 = vmatmul.bf16.gmra.mxu0 %v334
    %v439 = vpop.f32.mrf.mxu0
    %v440 = vadd.f32 %v355, %v439
    %v441 = vpop.f32.mrf.mxu0
    %v442 = vadd.f32 %v355, %v441
    %443 = vmatmul.bf16.gmra.mxu0 %v335
    %v444 = vpop.f32.mrf.mxu0
    %v445 = vadd.f32 %v355, %v444
    %v446 = vpop.f32.mrf.mxu0
    %v447 = vadd.f32 %v355, %v446
    %448 = vmatmul.bf16.gmra.mxu0 %v336
    %v449 = vpop.f32.mrf.mxu0
    %v450 = vadd.f32 %v355, %v449
    %v451 = vpop.f32.mrf.mxu0
    %v452 = vadd.f32 %v355, %v451
    %453 = vdwg.mxu0
    %v454 = vmax.f32 %v415, 0.0
    %v455 = vmax.f32 %v417, 0.0
    %v456 = vmax.f32 %v420, 0.0
    %v457 = vmax.f32 %v422, 0.0
    %v458 = vmax.f32 %v425, 0.0
    %v459 = vmax.f32 %v427, 0.0
    %v460 = vmax.f32 %v430, 0.0
    %v461 = vmax.f32 %v432, 0.0
    %v462 = vmax.f32 %v435, 0.0
    %v463 = vmax.f32 %v437, 0.0
    %v464 = vmax.f32 %v440, 0.0
    %v465 = vmax.f32 %v442, 0.0
    %v466 = vmax.f32 %v445, 0.0
    %v467 = vmax.f32 %v447, 0.0
    %v468 = vmax.f32 %v450, 0.0
    %v469 = vmax.f32 %v452, 0.0
    %v470 = vpack.c.bf16 %v455, %v454
    %v471 = vpack.c.bf16 %v457, %v456
    %v472 = vpack.c.bf16 %v459, %v458
    %v473 = vpack.c.bf16 %v461, %v460
    %v474 = vpack.c.bf16 %v463, %v462
    %v475 = vpack.c.bf16 %v465, %v464
    %v476 = vpack.c.bf16 %v467, %v466
    %v477 = vpack.c.bf16 %v469, %v468
    %v478 = vld [vmem:[#allocation5] sm:$0xf]
    %v479 = vld [vmem:[#allocation5 + $0x4] sm:$0xf]
    %v480 = vld [vmem:[#allocation5 + $0x8] sm:$0xf]
    %v481 = vld [vmem:[#allocation5 + $0xc] sm:$0xf]
    %v482 = vld [vmem:[#allocation5 + $0x10] sm:$0xf]
    %v483 = vld [vmem:[#allocation5 + $0x14] sm:$0xf]
    %v484 = vld [vmem:[#allocation5 + $0x18] sm:$0xf]
    %v485 = vld [vmem:[#allocation5 + $0x1c] sm:$0xf]
    %v486 = vld [vmem:[#allocation5 + $0x20] sm:$0xf]
    %v487 = vld [vmem:[#allocation5 + $0x24] sm:$0xf]
    %v488 = vld [vmem:[#allocation5 + $0x28] sm:$0xf]
    %v489 = vld [vmem:[#allocation5 + $0x2c] sm:$0xf]
    %v490 = vld [vmem:[#allocation5 + $0x30] sm:$0xf]
    %v491 = vld [vmem:[#allocation5 + $0x34] sm:$0xf]
    %v492 = vld [vmem:[#allocation5 + $0x38] sm:$0xf]
    %v493 = vld [vmem:[#allocation5 + $0x3c] sm:$0xf]
    %v494 = vld [vmem:[%s6] sm:$0x1]
    %v496 = vperm.slane %v494, 0
    %v514 = vunpack.c.l.b16 %v478
    %v515 = vunpack.c.l.b16 %v479
    %v516 = vunpack.c.l.b16 %v480
    %v517 = vunpack.c.l.b16 %v481
    %v518 = vunpack.c.l.b16 %v482
    %v519 = vunpack.c.l.b16 %v483
    %v520 = vunpack.c.l.b16 %v484
    %v521 = vunpack.c.l.b16 %v485
    %v522 = vunpack.c.l.b16 %v486
    %v523 = vunpack.c.l.b16 %v487
    %v524 = vunpack.c.l.b16 %v488
    %v525 = vunpack.c.l.b16 %v489
    %v526 = vunpack.c.l.b16 %v490
    %v527 = vunpack.c.l.b16 %v491
    %v528 = vunpack.c.l.b16 %v492
    %v529 = vunpack.c.l.b16 %v493
    %v530 = vpack.c.b16 %v515, %v514
    %v531 = vpack.c.b16 %v517, %v516
    %v532 = vpack.c.b16 %v519, %v518
    %v533 = vpack.c.b16 %v521, %v520
    %v534 = vpack.c.b16 %v523, %v522
    %v535 = vpack.c.b16 %v525, %v524
    %v536 = vpack.c.b16 %v527, %v526
    %v537 = vpack.c.b16 %v529, %v528
    %546 = vmatpush.bf16.msra.mxu0 %v537
    %547 = vmatpush.bf16.msra.mxu0 %v536
    %548 = vmatpush.bf16.msra.mxu0 %v535
    %549 = vmatpush.bf16.msra.mxu0 %v534
    %550 = vmatpush.bf16.msra.mxu0 %v533
    %551 = vmatpush.bf16.msra.mxu0 %v532
    %552 = vmatpush.bf16.msra.mxu0 %v531
    %553 = vmatpush.bf16.msra.mxu0 %v530
    %554 = vmatmul.bf16.gmra.mxu0 %v470
    %v555 = vpop.f32.mrf.mxu0
    %v556 = vadd.f32 %v496, %v555
    %v557 = vpop.f32.mrf.mxu0
    %v558 = vadd.f32 %v496, %v557
    %559 = vmatmul.bf16.gmra.mxu0 %v471
    %v560 = vpop.f32.mrf.mxu0
    %v561 = vadd.f32 %v496, %v560
    %v562 = vpop.f32.mrf.mxu0
    %v563 = vadd.f32 %v496, %v562
    %564 = vmatmul.bf16.gmra.mxu0 %v472
    %v565 = vpop.f32.mrf.mxu0
    %v566 = vadd.f32 %v496, %v565
    %v567 = vpop.f32.mrf.mxu0
    %v568 = vadd.f32 %v496, %v567
    %569 = vmatmul.bf16.gmra.mxu0 %v473
    %v570 = vpop.f32.mrf.mxu0
    %v571 = vadd.f32 %v496, %v570
    %v572 = vpop.f32.mrf.mxu0
    %v573 = vadd.f32 %v496, %v572
    %574 = vmatmul.bf16.gmra.mxu0 %v474
    %v575 = vpop.f32.mrf.mxu0
    %v576 = vadd.f32 %v496, %v575
    %v577 = vpop.f32.mrf.mxu0
    %v578 = vadd.f32 %v496, %v577
    %579 = vmatmul.bf16.gmra.mxu0 %v475
    %v580 = vpop.f32.mrf.mxu0
    %v581 = vadd.f32 %v496, %v580
    %v582 = vpop.f32.mrf.mxu0
    %v583 = vadd.f32 %v496, %v582
    %584 = vmatmul.bf16.gmra.mxu0 %v476
    %v585 = vpop.f32.mrf.mxu0
    %v586 = vadd.f32 %v496, %v585
    %v587 = vpop.f32.mrf.mxu0
    %v588 = vadd.f32 %v496, %v587
    %589 = vmatmul.bf16.gmra.mxu0 %v477
    %v590 = vpop.f32.mrf.mxu0
    %v591 = vadd.f32 %v496, %v590
    %v592 = vpop.f32.mrf.mxu0
    %v593 = vadd.f32 %v496, %v592
    %594 = vdwg.mxu0
    %v595 = vmax.f32 %v556, 0.0
    %v596 = vmax.f32 %v558, 0.0
    %v597 = vmax.f32 %v561, 0.0
    %v598 = vmax.f32 %v563, 0.0
    %v599 = vmax.f32 %v566, 0.0
    %v600 = vmax.f32 %v568, 0.0
    %v601 = vmax.f32 %v571, 0.0
    %v602 = vmax.f32 %v573, 0.0
    %v603 = vmax.f32 %v576, 0.0
    %v604 = vmax.f32 %v578, 0.0
    %v605 = vmax.f32 %v581, 0.0
    %v606 = vmax.f32 %v583, 0.0
    %v607 = vmax.f32 %v586, 0.0
    %v608 = vmax.f32 %v588, 0.0
    %v609 = vmax.f32 %v591, 0.0
    %v610 = vmax.f32 %v593, 0.0
    %v611 = vpack.c.bf16 %v596, %v595
    %v612 = vpack.c.bf16 %v598, %v597
    %v613 = vpack.c.bf16 %v600, %v599
    %v614 = vpack.c.bf16 %v602, %v601
    %v615 = vpack.c.bf16 %v604, %v603
    %v616 = vpack.c.bf16 %v606, %v605
    %v617 = vpack.c.bf16 %v608, %v607
    %v618 = vpack.c.bf16 %v610, %v609
    %v619 = vld [vmem:[#allocation7] sm:$0xf]
    %v620 = vld [vmem:[#allocation7 + $0x4] sm:$0xf]
    %v621 = vld [vmem:[#allocation7 + $0x8] sm:$0xf]
    %v622 = vld [vmem:[#allocation7 + $0xc] sm:$0xf]
    %v623 = vld [vmem:[#allocation7 + $0x10] sm:$0xf]
    %v624 = vld [vmem:[#allocation7 + $0x14] sm:$0xf]
    %v625 = vld [vmem:[#allocation7 + $0x18] sm:$0xf]
    %v626 = vld [vmem:[#allocation7 + $0x1c] sm:$0xf]
    %v627 = vld [vmem:[#allocation7 + $0x20] sm:$0xf]
    %v628 = vld [vmem:[#allocation7 + $0x24] sm:$0xf]
    %v629 = vld [vmem:[#allocation7 + $0x28] sm:$0xf]
    %v630 = vld [vmem:[#allocation7 + $0x2c] sm:$0xf]
    %v631 = vld [vmem:[#allocation7 + $0x30] sm:$0xf]
    %v632 = vld [vmem:[#allocation7 + $0x34] sm:$0xf]
    %v633 = vld [vmem:[#allocation7 + $0x38] sm:$0xf]
    %v634 = vld [vmem:[#allocation7 + $0x3c] sm:$0xf]
    %v635 = vld [vmem:[%s8] sm:$0x1]
    %v637 = vperm.slane %v635, 0
    %v655 = vunpack.c.l.b16 %v619
    %v656 = vunpack.c.l.b16 %v620
    %v657 = vunpack.c.l.b16 %v621
    %v658 = vunpack.c.l.b16 %v622
    %v659 = vunpack.c.l.b16 %v623
    %v660 = vunpack.c.l.b16 %v624
    %v661 = vunpack.c.l.b16 %v625
    %v662 = vunpack.c.l.b16 %v626
    %v663 = vunpack.c.l.b16 %v627
    %v664 = vunpack.c.l.b16 %v628
    %v665 = vunpack.c.l.b16 %v629
    %v666 = vunpack.c.l.b16 %v630
    %v667 = vunpack.c.l.b16 %v631
    %v668 = vunpack.c.l.b16 %v632
    %v669 = vunpack.c.l.b16 %v633
    %v670 = vunpack.c.l.b16 %v634
    %v671 = vpack.c.b16 %v656, %v655
    %v672 = vpack.c.b16 %v658, %v657
    %v673 = vpack.c.b16 %v660, %v659
    %v674 = vpack.c.b16 %v662, %v661
    %v675 = vpack.c.b16 %v664, %v663
    %v676 = vpack.c.b16 %v666, %v665
    %v677 = vpack.c.b16 %v668, %v667
    %v678 = vpack.c.b16 %v670, %v669
    %687 = vmatpush.bf16.msra.mxu0 %v678
    %688 = vmatpush.bf16.msra.mxu0 %v677
    %689 = vmatpush.bf16.msra.mxu0 %v676
    %690 = vmatpush.bf16.msra.mxu0 %v675
    %691 = vmatpush.bf16.msra.mxu0 %v674
    %692 = vmatpush.bf16.msra.mxu0 %v673
    %693 = vmatpush.bf16.msra.mxu0 %v672
    %694 = vmatpush.bf16.msra.mxu0 %v671
    %695 = vmatmul.bf16.gmra.mxu0 %v611
    %v696 = vpop.f32.mrf.mxu0
    %v697 = vadd.f32 %v637, %v696
    %v698 = vpop.f32.mrf.mxu0
    %v699 = vadd.f32 %v637, %v698
    %700 = vmatmul.bf16.gmra.mxu0 %v612
    %v701 = vpop.f32.mrf.mxu0
    %v702 = vadd.f32 %v637, %v701
    %v703 = vpop.f32.mrf.mxu0
    %v704 = vadd.f32 %v637, %v703
    %705 = vmatmul.bf16.gmra.mxu0 %v613
    %v706 = vpop.f32.mrf.mxu0
    %v707 = vadd.f32 %v637, %v706
    %v708 = vpop.f32.mrf.mxu0
    %v709 = vadd.f32 %v637, %v708
    %710 = vmatmul.bf16.gmra.mxu0 %v614
    %v711 = vpop.f32.mrf.mxu0
    %v712 = vadd.f32 %v637, %v711
    %v713 = vpop.f32.mrf.mxu0
    %v714 = vadd.f32 %v637, %v713
    %715 = vmatmul.bf16.gmra.mxu0 %v615
    %v716 = vpop.f32.mrf.mxu0
    %v717 = vadd.f32 %v637, %v716
    %v718 = vpop.f32.mrf.mxu0
    %v719 = vadd.f32 %v637, %v718
    %720 = vmatmul.bf16.gmra.mxu0 %v616
    %v721 = vpop.f32.mrf.mxu0
    %v722 = vadd.f32 %v637, %v721
    %v723 = vpop.f32.mrf.mxu0
    %v724 = vadd.f32 %v637, %v723
    %725 = vmatmul.bf16.gmra.mxu0 %v617
    %v726 = vpop.f32.mrf.mxu0
    %v727 = vadd.f32 %v637, %v726
    %v728 = vpop.f32.mrf.mxu0
    %v729 = vadd.f32 %v637, %v728
    %730 = vmatmul.bf16.gmra.mxu0 %v618
    %v731 = vpop.f32.mrf.mxu0
    %v732 = vadd.f32 %v637, %v731
    %v733 = vpop.f32.mrf.mxu0
    %v734 = vadd.f32 %v637, %v733
    %735 = vdwg.mxu0
    %v736 = vmax.f32 %v697, 0.0
    %v737 = vmax.f32 %v699, 0.0
    %v738 = vmax.f32 %v702, 0.0
    %v739 = vmax.f32 %v704, 0.0
    %v740 = vmax.f32 %v707, 0.0
    %v741 = vmax.f32 %v709, 0.0
    %v742 = vmax.f32 %v712, 0.0
    %v743 = vmax.f32 %v714, 0.0
    %v744 = vmax.f32 %v717, 0.0
    %v745 = vmax.f32 %v719, 0.0
    %v746 = vmax.f32 %v722, 0.0
    %v747 = vmax.f32 %v724, 0.0
    %v748 = vmax.f32 %v727, 0.0
    %v749 = vmax.f32 %v729, 0.0
    %v750 = vmax.f32 %v732, 0.0
    %v751 = vmax.f32 %v734, 0.0
    %v752 = vpack.c.bf16 %v737, %v736
    %v753 = vpack.c.bf16 %v739, %v738
    %v754 = vpack.c.bf16 %v741, %v740
    %v755 = vpack.c.bf16 %v743, %v742
    %v756 = vpack.c.bf16 %v745, %v744
    %v757 = vpack.c.bf16 %v747, %v746
    %v758 = vpack.c.bf16 %v749, %v748
    %v759 = vpack.c.bf16 %v751, %v750
    %v760 = vld [vmem:[#allocation8] sm:$0xf]
    %v761 = vld [vmem:[#allocation8 + $0x4] sm:$0xf]
    %v762 = vld [vmem:[#allocation8 + $0x8] sm:$0xf]
    %v763 = vld [vmem:[#allocation8 + $0xc] sm:$0xf]
    %v764 = vld [vmem:[#allocation8 + $0x10] sm:$0xf]
    %v765 = vld [vmem:[#allocation8 + $0x14] sm:$0xf]
    %v766 = vld [vmem:[#allocation8 + $0x18] sm:$0xf]
    %v767 = vld [vmem:[#allocation8 + $0x1c] sm:$0xf]
    %v768 = vld [vmem:[#allocation8 + $0x20] sm:$0xf]
    %v769 = vld [vmem:[#allocation8 + $0x24] sm:$0xf]
    %v770 = vld [vmem:[#allocation8 + $0x28] sm:$0xf]
    %v771 = vld [vmem:[#allocation8 + $0x2c] sm:$0xf]
    %v772 = vld [vmem:[#allocation8 + $0x30] sm:$0xf]
    %v773 = vld [vmem:[#allocation8 + $0x34] sm:$0xf]
    %v774 = vld [vmem:[#allocation8 + $0x38] sm:$0xf]
    %v775 = vld [vmem:[#allocation8 + $0x3c] sm:$0xf]
    %v776 = vld [vmem:[%s10] sm:$0x1]
    %v778 = vperm.slane %v776, 0
    %v796 = vunpack.c.l.b16 %v760
    %v797 = vunpack.c.l.b16 %v761
    %v798 = vunpack.c.l.b16 %v762
    %v799 = vunpack.c.l.b16 %v763
    %v800 = vunpack.c.l.b16 %v764
    %v801 = vunpack.c.l.b16 %v765
    %v802 = vunpack.c.l.b16 %v766
    %v803 = vunpack.c.l.b16 %v767
    %v804 = vunpack.c.l.b16 %v768
    %v805 = vunpack.c.l.b16 %v769
    %v806 = vunpack.c.l.b16 %v770
    %v807 = vunpack.c.l.b16 %v771
    %v808 = vunpack.c.l.b16 %v772
    %v809 = vunpack.c.l.b16 %v773
    %v810 = vunpack.c.l.b16 %v774
    %v811 = vunpack.c.l.b16 %v775
    %v812 = vpack.c.b16 %v797, %v796
    %v813 = vpack.c.b16 %v799, %v798
    %v814 = vpack.c.b16 %v801, %v800
    %v815 = vpack.c.b16 %v803, %v802
    %v816 = vpack.c.b16 %v805, %v804
    %v817 = vpack.c.b16 %v807, %v806
    %v818 = vpack.c.b16 %v809, %v808
    %v819 = vpack.c.b16 %v811, %v810
    %828 = vmatpush.bf16.msra.mxu0 %v819
    %829 = vmatpush.bf16.msra.mxu0 %v818
    %830 = vmatpush.bf16.msra.mxu0 %v817
    %831 = vmatpush.bf16.msra.mxu0 %v816
    %832 = vmatpush.bf16.msra.mxu0 %v815
    %833 = vmatpush.bf16.msra.mxu0 %v814
    %834 = vmatpush.bf16.msra.mxu0 %v813
    %835 = vmatpush.bf16.msra.mxu0 %v812
    %836 = vmatmul.bf16.gmra.mxu0 %v752
    %v837 = vpop.f32.mrf.mxu0
    %v838 = vadd.f32 %v778, %v837
    %v839 = vpop.f32.mrf.mxu0
    %v840 = vadd.f32 %v778, %v839
    %841 = vmatmul.bf16.gmra.mxu0 %v753
    %v842 = vpop.f32.mrf.mxu0
    %v843 = vadd.f32 %v778, %v842
    %v844 = vpop.f32.mrf.mxu0
    %v845 = vadd.f32 %v778, %v844
    %846 = vmatmul.bf16.gmra.mxu0 %v754
    %v847 = vpop.f32.mrf.mxu0
    %v848 = vadd.f32 %v778, %v847
    %v849 = vpop.f32.mrf.mxu0
    %v850 = vadd.f32 %v778, %v849
    %851 = vmatmul.bf16.gmra.mxu0 %v755
    %v852 = vpop.f32.mrf.mxu0
    %v853 = vadd.f32 %v778, %v852
    %v854 = vpop.f32.mrf.mxu0
    %v855 = vadd.f32 %v778, %v854
    %856 = vmatmul.bf16.gmra.mxu0 %v756
    %v857 = vpop.f32.mrf.mxu0
    %v858 = vadd.f32 %v778, %v857
    %v859 = vpop.f32.mrf.mxu0
    %v860 = vadd.f32 %v778, %v859
    %861 = vmatmul.bf16.gmra.mxu0 %v757
    %v862 = vpop.f32.mrf.mxu0
    %v863 = vadd.f32 %v778, %v862
    %v864 = vpop.f32.mrf.mxu0
    %v865 = vadd.f32 %v778, %v864
    %866 = vmatmul.bf16.gmra.mxu0 %v758
    %v867 = vpop.f32.mrf.mxu0
    %v868 = vadd.f32 %v778, %v867
    %v869 = vpop.f32.mrf.mxu0
    %v870 = vadd.f32 %v778, %v869
    %871 = vmatmul.bf16.gmra.mxu0 %v759
    %v872 = vpop.f32.mrf.mxu0
    %v873 = vadd.f32 %v778, %v872
    %v874 = vpop.f32.mrf.mxu0
    %v875 = vadd.f32 %v778, %v874
    %876 = vdwg.mxu0
    %877 = vmax.xlane.f32.xlu0 %v838
    %v878 = vpop.xlane.xlu0 %877
    %879 = vmax.xlane.f32.xlu0 %v840
    %v880 = vpop.xlane.xlu0 %879
    %881 = vmax.xlane.f32.xlu0 %v843
    %v882 = vpop.xlane.xlu0 %881
    %883 = vmax.xlane.f32.xlu0 %v845
    %v884 = vpop.xlane.xlu0 %883
    %885 = vmax.xlane.f32.xlu0 %v848
    %v886 = vpop.xlane.xlu0 %885
    %887 = vmax.xlane.f32.xlu0 %v850
    %v888 = vpop.xlane.xlu0 %887
    %889 = vmax.xlane.f32.xlu0 %v853
    %v890 = vpop.xlane.xlu0 %889
    %891 = vmax.xlane.f32.xlu0 %v855
    %v892 = vpop.xlane.xlu0 %891
    %893 = vmax.xlane.f32.xlu0 %v858
    %v894 = vpop.xlane.xlu0 %893
    %895 = vmax.xlane.f32.xlu0 %v860
    %v896 = vpop.xlane.xlu0 %895
    %897 = vmax.xlane.f32.xlu0 %v863
    %v898 = vpop.xlane.xlu0 %897
    %899 = vmax.xlane.f32.xlu0 %v865
    %v900 = vpop.xlane.xlu0 %899
    %901 = vmax.xlane.f32.xlu0 %v868
    %v902 = vpop.xlane.xlu0 %901
    %903 = vmax.xlane.f32.xlu0 %v870
    %v904 = vpop.xlane.xlu0 %903
    %905 = vmax.xlane.f32.xlu0 %v873
    %v906 = vpop.xlane.xlu0 %905
    %907 = vmax.xlane.f32.xlu0 %v875
    %v908 = vpop.xlane.xlu0 %907
    %v909 = vsub.f32 %v838, %v878
    %v910 = vsub.f32 %v840, %v880
    %v911 = vsub.f32 %v843, %v882
    %v912 = vsub.f32 %v845, %v884
    %v913 = vsub.f32 %v848, %v886
    %v914 = vsub.f32 %v850, %v888
    %v915 = vsub.f32 %v853, %v890
    %v916 = vsub.f32 %v855, %v892
    %v917 = vsub.f32 %v858, %v894
    %v918 = vsub.f32 %v860, %v896
    %v919 = vsub.f32 %v863, %v898
    %v920 = vsub.f32 %v865, %v900
    %v921 = vsub.f32 %v868, %v902
    %v922 = vsub.f32 %v870, %v904
    %v923 = vsub.f32 %v873, %v906
    %v924 = vsub.f32 %v875, %v908
    %v925 = vmul.f32 %v909, 1.442695
    %v926 = vpow.pop %v925
    %v927 = vmul.f32 %v910, 1.442695
    %v928 = vpow.pop %v927
    %v929 = vmul.f32 %v911, 1.442695
    %v930 = vpow.pop %v929
    %v931 = vmul.f32 %v912, 1.442695
    %v932 = vpow.pop %v931
    %v933 = vmul.f32 %v913, 1.442695
    %v934 = vpow.pop %v933
    %v935 = vmul.f32 %v914, 1.442695
    %v936 = vpow.pop %v935
    %v937 = vmul.f32 %v915, 1.442695
    %v938 = vpow.pop %v937
    %v939 = vmul.f32 %v916, 1.442695
    %v940 = vpow.pop %v939
    %v941 = vmul.f32 %v917, 1.442695
    %v942 = vpow.pop %v941
    %v943 = vmul.f32 %v918, 1.442695
    %v944 = vpow.pop %v943
    %v945 = vmul.f32 %v919, 1.442695
    %v946 = vpow.pop %v945
    %v947 = vmul.f32 %v920, 1.442695
    %v948 = vpow.pop %v947
    %v949 = vmul.f32 %v921, 1.442695
    %v950 = vpow.pop %v949
    %v951 = vmul.f32 %v922, 1.442695
    %v952 = vpow.pop %v951
    %v953 = vmul.f32 %v923, 1.442695
    %v954 = vpow.pop %v953
    %v955 = vmul.f32 %v924, 1.442695
    %v956 = vpow.pop %v955
    %957 = vadd.xlane.f32.xlu0 %v926
    %v958 = vpop.xlane.xlu0 %957
    %959 = vadd.xlane.f32.xlu0 %v928
    %v960 = vpop.xlane.xlu0 %959
    %961 = vadd.xlane.f32.xlu0 %v930
    %v962 = vpop.xlane.xlu0 %961
    %963 = vadd.xlane.f32.xlu0 %v932
    %v964 = vpop.xlane.xlu0 %963
    %965 = vadd.xlane.f32.xlu0 %v934
    %v966 = vpop.xlane.xlu0 %965
    %967 = vadd.xlane.f32.xlu0 %v936
    %v968 = vpop.xlane.xlu0 %967
    %969 = vadd.xlane.f32.xlu0 %v938
    %v970 = vpop.xlane.xlu0 %969
    %971 = vadd.xlane.f32.xlu0 %v940
    %v972 = vpop.xlane.xlu0 %971
    %973 = vadd.xlane.f32.xlu0 %v942
    %v974 = vpop.xlane.xlu0 %973
    %975 = vadd.xlane.f32.xlu0 %v944
    %v976 = vpop.xlane.xlu0 %975
    %977 = vadd.xlane.f32.xlu0 %v946
    %v978 = vpop.xlane.xlu0 %977
    %979 = vadd.xlane.f32.xlu0 %v948
    %v980 = vpop.xlane.xlu0 %979
    %981 = vadd.xlane.f32.xlu0 %v950
    %v982 = vpop.xlane.xlu0 %981
    %983 = vadd.xlane.f32.xlu0 %v952
    %v984 = vpop.xlane.xlu0 %983
    %985 = vadd.xlane.f32.xlu0 %v954
    %v986 = vpop.xlane.xlu0 %985
    %987 = vadd.xlane.f32.xlu0 %v956
    %v988 = vpop.xlane.xlu0 %987
    %v989 = vrcp.pop %v958
    %v990 = vrcp.pop %v960
    %v991 = vrcp.pop %v962
    %v992 = vrcp.pop %v964
    %v993 = vrcp.pop %v966
    %v994 = vrcp.pop %v968
    %v995 = vrcp.pop %v970
    %v996 = vrcp.pop %v972
    %v997 = vrcp.pop %v974
    %v998 = vrcp.pop %v976
    %v999 = vrcp.pop %v978
    %v1000 = vrcp.pop %v980
    %v1001 = vrcp.pop %v982
    %v1002 = vrcp.pop %v984
    %v1003 = vrcp.pop %v986
    %v1004 = vrcp.pop %v988
    %v1005 = vmul.f32 %v926, %v989
    %v1006 = vmul.f32 %v928, %v990
    %v1007 = vmul.f32 %v930, %v991
    %v1008 = vmul.f32 %v932, %v992
    %v1009 = vmul.f32 %v934, %v993
    %v1010 = vmul.f32 %v936, %v994
    %v1011 = vmul.f32 %v938, %v995
    %v1012 = vmul.f32 %v940, %v996
    %v1013 = vmul.f32 %v942, %v997
    %v1014 = vmul.f32 %v944, %v998
    %v1015 = vmul.f32 %v946, %v999
    %v1016 = vmul.f32 %v948, %v1000
    %v1017 = vmul.f32 %v950, %v1001
    %v1018 = vmul.f32 %v952, %v1002
    %v1019 = vmul.f32 %v954, %v1003
    %v1020 = vmul.f32 %v956, %v1004
    %1021 = vst [vmem:[%s15] sm:$0xff] %v1005
    %1022 = vst [vmem:[%s15 + $0x8] sm:$0xff] %v1006
    %1023 = vst [vmem:[%s15 + $0x10] sm:$0xff] %v1007
    %1024 = vst [vmem:[%s15 + $0x18] sm:$0xff] %v1008
    %1025 = vst [vmem:[%s15 + $0x20] sm:$0xff] %v1009
    %1026 = vst [vmem:[%s15 + $0x28] sm:$0xff] %v1010
    %1027 = vst [vmem:[%s15 + $0x30] sm:$0xff] %v1011
    %1028 = vst [vmem:[%s15 + $0x38] sm:$0xff] %v1012
    %1029 = vst [vmem:[%s15 + $0x40] sm:$0xff] %v1013
    %1030 = vst [vmem:[%s15 + $0x48] sm:$0xff] %v1014
    %1031 = vst [vmem:[%s15 + $0x50] sm:$0xff] %v1015
    %1032 = vst [vmem:[%s15 + $0x58] sm:$0xff] %v1016
    %1033 = vst [vmem:[%s15 + $0x60] sm:$0xff] %v1017
    %1034 = vst [vmem:[%s15 + $0x68] sm:$0xff] %v1018
    %1035 = vst [vmem:[%s15 + $0x70] sm:$0xff] %v1019
    %1036 = vst [vmem:[%s15 + $0x78] sm:$0xff] %v1020
    %v1037 = vld [vmem:[#allocation10] sm:$0xf]
    %v1038 = vld [vmem:[#allocation10 + $0x4] sm:$0xf]
    %v1039 = vld [vmem:[#allocation10 + $0x8] sm:$0xf]
    %v1040 = vld [vmem:[#allocation10 + $0xc] sm:$0xf]
    %v1041 = vld [vmem:[#allocation10 + $0x10] sm:$0xf]
    %v1042 = vld [vmem:[#allocation10 + $0x14] sm:$0xf]
    %v1043 = vld [vmem:[#allocation10 + $0x18] sm:$0xf]
    %v1044 = vld [vmem:[#allocation10 + $0x1c] sm:$0xf]
    %v1045 = vld [vmem:[#allocation10 + $0x20] sm:$0xf]
    %v1046 = vld [vmem:[#allocation10 + $0x24] sm:$0xf]
    %v1047 = vld [vmem:[#allocation10 + $0x28] sm:$0xf]
    %v1048 = vld [vmem:[#allocation10 + $0x2c] sm:$0xf]
    %v1049 = vld [vmem:[#allocation10 + $0x30] sm:$0xf]
    %v1050 = vld [vmem:[#allocation10 + $0x34] sm:$0xf]
    %v1051 = vld [vmem:[#allocation10 + $0x38] sm:$0xf]
    %v1052 = vld [vmem:[#allocation10 + $0x3c] sm:$0xf]
    %v1053 = vld [vmem:[%s12] sm:$0x1]
    %v1055 = vperm.slane %v1053, 0
    %v1073 = vunpack.c.l.b16 %v1037
    %v1074 = vunpack.c.l.b16 %v1038
    %v1075 = vunpack.c.l.b16 %v1039
    %v1076 = vunpack.c.l.b16 %v1040
    %v1077 = vunpack.c.l.b16 %v1041
    %v1078 = vunpack.c.l.b16 %v1042
    %v1079 = vunpack.c.l.b16 %v1043
    %v1080 = vunpack.c.l.b16 %v1044
    %v1081 = vunpack.c.l.b16 %v1045
    %v1082 = vunpack.c.l.b16 %v1046
    %v1083 = vunpack.c.l.b16 %v1047
    %v1084 = vunpack.c.l.b16 %v1048
    %v1085 = vunpack.c.l.b16 %v1049
    %v1086 = vunpack.c.l.b16 %v1050
    %v1087 = vunpack.c.l.b16 %v1051
    %v1088 = vunpack.c.l.b16 %v1052
    %v1089 = vpack.c.b16 %v1074, %v1073
    %v1090 = vpack.c.b16 %v1076, %v1075
    %v1091 = vpack.c.b16 %v1078, %v1077
    %v1092 = vpack.c.b16 %v1080, %v1079
    %v1093 = vpack.c.b16 %v1082, %v1081
    %v1094 = vpack.c.b16 %v1084, %v1083
    %v1095 = vpack.c.b16 %v1086, %v1085
    %v1096 = vpack.c.b16 %v1088, %v1087
    %1105 = vmatpush.bf16.msra.mxu0 %v1096
    %1106 = vmatpush.bf16.msra.mxu0 %v1095
    %1107 = vmatpush.bf16.msra.mxu0 %v1094
    %1108 = vmatpush.bf16.msra.mxu0 %v1093
    %1109 = vmatpush.bf16.msra.mxu0 %v1092
    %1110 = vmatpush.bf16.msra.mxu0 %v1091
    %1111 = vmatpush.bf16.msra.mxu0 %v1090
    %1112 = vmatpush.bf16.msra.mxu0 %v1089
    %1113 = vmatmul.bf16.gmra.mxu0 %v752
    %v1114 = vpop.f32.mrf.mxu0
    %v1115 = vadd.f32 %v1055, %v1114
    %v1116 = vpop.f32.mrf.mxu0
    %v1117 = vadd.f32 %v1055, %v1116
    %1118 = vmatmul.bf16.gmra.mxu0 %v753
    %v1119 = vpop.f32.mrf.mxu0
    %v1120 = vadd.f32 %v1055, %v1119
    %v1121 = vpop.f32.mrf.mxu0
    %v1122 = vadd.f32 %v1055, %v1121
    %1123 = vmatmul.bf16.gmra.mxu0 %v754
    %v1124 = vpop.f32.mrf.mxu0
    %v1125 = vadd.f32 %v1055, %v1124
    %v1126 = vpop.f32.mrf.mxu0
    %v1127 = vadd.f32 %v1055, %v1126
    %1128 = vmatmul.bf16.gmra.mxu0 %v755
    %v1129 = vpop.f32.mrf.mxu0
    %v1130 = vadd.f32 %v1055, %v1129
    %v1131 = vpop.f32.mrf.mxu0
    %v1132 = vadd.f32 %v1055, %v1131
    %1133 = vmatmul.bf16.gmra.mxu0 %v756
    %v1134 = vpop.f32.mrf.mxu0
    %v1135 = vadd.f32 %v1055, %v1134
    %v1136 = vpop.f32.mrf.mxu0
    %v1137 = vadd.f32 %v1055, %v1136
    %1138 = vmatmul.bf16.gmra.mxu0 %v757
    %v1139 = vpop.f32.mrf.mxu0
    %v1140 = vadd.f32 %v1055, %v1139
    %v1141 = vpop.f32.mrf.mxu0
    %v1142 = vadd.f32 %v1055, %v1141
    %1143 = vmatmul.bf16.gmra.mxu0 %v758
    %v1144 = vpop.f32.mrf.mxu0
    %v1145 = vadd.f32 %v1055, %v1144
    %v1146 = vpop.f32.mrf.mxu0
    %v1147 = vadd.f32 %v1055, %v1146
    %1148 = vmatmul.bf16.gmra.mxu0 %v759
    %v1149 = vpop.f32.mrf.mxu0
    %v1150 = vadd.f32 %v1055, %v1149
    %v1151 = vpop.f32.mrf.mxu0
    %v1152 = vadd.f32 %v1055, %v1151
    %1153 = vdwg.mxu0
    %v1154 = vmax.f32 %v1115, 0.0
    %v1155 = vmax.f32 %v1117, 0.0
    %v1156 = vmax.f32 %v1120, 0.0
    %v1157 = vmax.f32 %v1122, 0.0
    %v1158 = vmax.f32 %v1125, 0.0
    %v1159 = vmax.f32 %v1127, 0.0
    %v1160 = vmax.f32 %v1130, 0.0
    %v1161 = vmax.f32 %v1132, 0.0
    %v1162 = vmax.f32 %v1135, 0.0
    %v1163 = vmax.f32 %v1137, 0.0
    %v1164 = vmax.f32 %v1140, 0.0
    %v1165 = vmax.f32 %v1142, 0.0
    %v1166 = vmax.f32 %v1145, 0.0
    %v1167 = vmax.f32 %v1147, 0.0
    %v1168 = vmax.f32 %v1150, 0.0
    %v1169 = vmax.f32 %v1152, 0.0
    %v1170 = vld [vmem:[%s13] sm:$0x1]
    %v1172 = vperm.slane %v1170, 0
    %v1174 = vmul.f32 %v1154, %v1172
    %v1175 = vmul.f32 %v1155, %v1172
    %v1176 = vmul.f32 %v1156, %v1172
    %v1177 = vmul.f32 %v1157, %v1172
    %v1178 = vmul.f32 %v1158, %v1172
    %v1179 = vmul.f32 %v1159, %v1172
    %v1180 = vmul.f32 %v1160, %v1172
    %v1181 = vmul.f32 %v1161, %v1172
    %v1182 = vmul.f32 %v1162, %v1172
    %v1183 = vmul.f32 %v1163, %v1172
    %v1184 = vmul.f32 %v1164, %v1172
    %v1185 = vmul.f32 %v1165, %v1172
    %v1186 = vmul.f32 %v1166, %v1172
    %v1187 = vmul.f32 %v1167, %v1172
    %v1188 = vmul.f32 %v1168, %v1172
    %v1189 = vmul.f32 %v1169, %v1172
    %1190 = vadd.xlane.f32.xlu0 %v1174
    %v1191 = vpop.xlane.xlu0 %1190
    %1192 = vadd.xlane.f32.xlu0 %v1175
    %v1193 = vpop.xlane.xlu0 %1192
    %1194 = vadd.xlane.f32.xlu0 %v1176
    %v1195 = vpop.xlane.xlu0 %1194
    %1196 = vadd.xlane.f32.xlu0 %v1177
    %v1197 = vpop.xlane.xlu0 %1196
    %1198 = vadd.xlane.f32.xlu0 %v1178
    %v1199 = vpop.xlane.xlu0 %1198
    %1200 = vadd.xlane.f32.xlu0 %v1179
    %v1201 = vpop.xlane.xlu0 %1200
    %1202 = vadd.xlane.f32.xlu0 %v1180
    %v1203 = vpop.xlane.xlu0 %1202
    %1204 = vadd.xlane.f32.xlu0 %v1181
    %v1205 = vpop.xlane.xlu0 %1204
    %1206 = vadd.xlane.f32.xlu0 %v1182
    %v1207 = vpop.xlane.xlu0 %1206
    %1208 = vadd.xlane.f32.xlu0 %v1183
    %v1209 = vpop.xlane.xlu0 %1208
    %1210 = vadd.xlane.f32.xlu0 %v1184
    %v1211 = vpop.xlane.xlu0 %1210
    %1212 = vadd.xlane.f32.xlu0 %v1185
    %v1213 = vpop.xlane.xlu0 %1212
    %1214 = vadd.xlane.f32.xlu0 %v1186
    %v1215 = vpop.xlane.xlu0 %1214
    %1216 = vadd.xlane.f32.xlu0 %v1187
    %v1217 = vpop.xlane.xlu0 %1216
    %1218 = vadd.xlane.f32.xlu0 %v1188
    %v1219 = vpop.xlane.xlu0 %1218
    %1220 = vadd.xlane.f32.xlu0 %v1189
    %v1221 = vpop.xlane.xlu0 %1220
    %v1222 = vld [vmem:[#allocation2] sm:$0x1]
    %v1224 = vperm.slane %v1222, 0
    %v1226 = vadd.f32 %v1191, %v1224
    %v1227 = vadd.f32 %v1193, %v1224
    %v1228 = vadd.f32 %v1195, %v1224
    %v1229 = vadd.f32 %v1197, %v1224
    %v1230 = vadd.f32 %v1199, %v1224
    %v1231 = vadd.f32 %v1201, %v1224
    %v1232 = vadd.f32 %v1203, %v1224
    %v1233 = vadd.f32 %v1205, %v1224
    %v1234 = vadd.f32 %v1207, %v1224
    %v1235 = vadd.f32 %v1209, %v1224
    %v1236 = vadd.f32 %v1211, %v1224
    %v1237 = vadd.f32 %v1213, %v1224
    %v1238 = vadd.f32 %v1215, %v1224
    %v1239 = vadd.f32 %v1217, %v1224
    %v1240 = vadd.f32 %v1219, %v1224
    %v1241 = vadd.f32 %v1221, %v1224
    %1243 = vset.pattern.permute.xlu0 0
    %1244 = vperm.xlu0 %1243, %v1226
    %v1245 = vpop.permute.xlu0 %1244
    %1248 = vset.pattern.permute.xlu0 0
    %1249 = vperm.xlu0 %1248, %v1227
    %v1250 = vpop.permute.xlu0 %1249
    %1253 = vset.pattern.permute.xlu0 0
    %1254 = vperm.xlu0 %1253, %v1228
    %v1255 = vpop.permute.xlu0 %1254
    %1258 = vset.pattern.permute.xlu0 0
    %1259 = vperm.xlu0 %1258, %v1229
    %v1260 = vpop.permute.xlu0 %1259
    %1263 = vset.pattern.permute.xlu0 0
    %1264 = vperm.xlu0 %1263, %v1230
    %v1265 = vpop.permute.xlu0 %1264
    %1268 = vset.pattern.permute.xlu0 0
    %1269 = vperm.xlu0 %1268, %v1231
    %v1270 = vpop.permute.xlu0 %1269
    %1273 = vset.pattern.permute.xlu0 0
    %1274 = vperm.xlu0 %1273, %v1232
    %v1275 = vpop.permute.xlu0 %1274
    %1278 = vset.pattern.permute.xlu0 0
    %1279 = vperm.xlu0 %1278, %v1233
    %v1280 = vpop.permute.xlu0 %1279
    %1283 = vset.pattern.permute.xlu0 0
    %1284 = vperm.xlu0 %1283, %v1234
    %v1285 = vpop.permute.xlu0 %1284
    %1288 = vset.pattern.permute.xlu0 0
    %1289 = vperm.xlu0 %1288, %v1235
    %v1290 = vpop.permute.xlu0 %1289
    %1293 = vset.pattern.permute.xlu0 0
    %1294 = vperm.xlu0 %1293, %v1236
    %v1295 = vpop.permute.xlu0 %1294
    %1298 = vset.pattern.permute.xlu0 0
    %1299 = vperm.xlu0 %1298, %v1237
    %v1300 = vpop.permute.xlu0 %1299
    %1303 = vset.pattern.permute.xlu0 0
    %1304 = vperm.xlu0 %1303, %v1238
    %v1305 = vpop.permute.xlu0 %1304
    %1308 = vset.pattern.permute.xlu0 0
    %1309 = vperm.xlu0 %1308, %v1239
    %v1310 = vpop.permute.xlu0 %1309
    %1313 = vset.pattern.permute.xlu0 0
    %1314 = vperm.xlu0 %1313, %v1240
    %v1315 = vpop.permute.xlu0 %1314
    %1318 = vset.pattern.permute.xlu0 0
    %1319 = vperm.xlu0 %1318, %v1241
    %v1320 = vpop.permute.xlu0 %1319
    %1322 = vst [vmem:[%s16] sm:$0xff] %v1245
    %1323 = vst [vmem:[%s16 + $0x8] sm:$0xff] %v1250
    %1324 = vst [vmem:[%s16 + $0x10] sm:$0xff] %v1255
    %1325 = vst [vmem:[%s16 + $0x18] sm:$0xff] %v1260
    %1326 = vst [vmem:[%s16 + $0x20] sm:$0xff] %v1265
    %1327 = vst [vmem:[%s16 + $0x28] sm:$0xff] %v1270
    %1328 = vst [vmem:[%s16 + $0x30] sm:$0xff] %v1275
    %1329 = vst [vmem:[%s16 + $0x38] sm:$0xff] %v1280
    %1330 = vst [vmem:[%s16 + $0x40] sm:$0xff] %v1285
    %1331 = vst [vmem:[%s16 + $0x48] sm:$0xff] %v1290
    %1332 = vst [vmem:[%s16 + $0x50] sm:$0xff] %v1295
    %1333 = vst [vmem:[%s16 + $0x58] sm:$0xff] %v1300
    %1334 = vst [vmem:[%s16 + $0x60] sm:$0xff] %v1305
    %1335 = vst [vmem:[%s16 + $0x68] sm:$0xff] %v1310
    %1336 = vst [vmem:[%s16 + $0x70] sm:$0xff] %v1315
    %1337 = vst [vmem:[%s16 + $0x78] sm:$0xff] %v1320
    // Predicated region
    $region82: #{grid2op_model_forward.1} parent=1 // pred_check
      _
    $region83: #{grid2op_model_forward.1} parent=1 // pred_check_branch
      %1339 = sbr.rel (0) target = $region85
    $region84: #{grid2op_model_forward.1} parent=1 // pred_region
      _
    $region85: #{grid2op_model_forward.1} parent=1 // pred_fallthru
      _
    // Predicated region
    $region86: #{grid2op_model_forward.1} parent=1 // pred_check
      _
    $region87: #{grid2op_model_forward.1} parent=1 // pred_check_branch
      %1341 = sbr.rel (0) target = $region89
    $region88: #{grid2op_model_forward.1} parent=1 // pred_region
      _
    $region89: #{grid2op_model_forward.1} parent=1 // pred_fallthru
      _
    // Predicated region
    $region90: #{grid2op_model_forward.1} parent=1 // pred_check
      _
    $region91: #{grid2op_model_forward.1} parent=1 // pred_check_branch
      %1343 = sbr.rel (0) target = $region93
    $region92: #{grid2op_model_forward.1} parent=1 // pred_region
      _
    $region93: #{grid2op_model_forward.1} parent=1 // pred_fallthru
      _
    // Predicated region
    $region94: #{grid2op_model_forward.1} parent=1 // pred_check
      _
    $region95: #{grid2op_model_forward.1} parent=1 // pred_check_branch
      %1345 = sbr.rel (0) target = $region97
    $region96: #{grid2op_model_forward.1} parent=1 // pred_region
      _
    $region97: #{grid2op_model_forward.1} parent=1 // pred_fallthru
      _
    %1346 = vsyncpa [#allocation4], 1
    %1347 = vsyncpa [#allocation6], 1
    %1348 = vsyncpa [#allocation9], 1

</llo_original>
